<compile_context>
chip_gen: v5e
topology: v5e:2x2
jax: 0.10.0
libtpu: 0.0.40
codegen_flags: <defaults>
</compile_context>

<pallas_src>
import functools

import jax
import jax.numpy as jnp
from jax.experimental import pallas as pl
from jax.experimental.pallas import tpu as pltpu  # noqa: F401  (kept for parity)


# -----------------------------------------------------------------------------
# Fused kernel: image conv encoder + text projections + fusion + L2 normalize
#               + similarity scores against the resident index. Single grid
#               step, everything stays in VMEM.
# -----------------------------------------------------------------------------
def _fused_kernel(img_ref, txt_ref,
                  convw_ref, convb_ref, wproj_ref, rpool_ref, ipb_ref,
                  txtw_ref, txtb_ref, fw_ref, fb_ref, idx_ref,
                  emb_ref, sc_ref):
    f32, bf16 = jnp.float32, jnp.bfloat16
    rows = rpool_ref.shape[1]        # (B-1)*(H+2) + H  (rows of the image slab)

    # ---- image encoder: 3x3 conv as 3 lane-aligned matmuls over the padded
    #      slab (dw offsets folded into convw offline, dw taps pre-summed).
    #      Rows straddling the batch boundary are junk and get zero weight in
    #      rpool.  Only a sublane shift (dh) per tap, full lane width. ----
    acc = jnp.dot(img_ref[0:rows, :], convw_ref[0], preferred_element_type=f32)
    acc += jnp.dot(img_ref[1:1 + rows, :], convw_ref[1], preferred_element_type=f32)
    acc += jnp.dot(img_ref[2:2 + rows, :], convw_ref[2], preferred_element_type=f32)
    conv = jnp.maximum(acc + convb_ref[...], 0.0)                     # [rows, W*Cc]

    # width-pool folded into the projection offline: conv @ (wpool @ proj_w)
    x = jnp.dot(conv.astype(bf16), wproj_ref[...],
                preferred_element_type=f32)                            # [rows, E]
    img_pre = jnp.dot(rpool_ref[...], x.astype(bf16),
                      preferred_element_type=f32)                      # [B, E]
    img_emb = jnp.maximum(img_pre + ipb_ref[...], 0.0)

    # ---- text encoders: sequence already mean-pooled in XLA; one
    #      block-diagonal matmul projects title|description together ----
    txt_pre = jnp.dot(txt_ref[...], txtw_ref[...],
                      preferred_element_type=f32)                      # [B, 2E]
    txt_emb = jnp.maximum(txt_pre + txtb_ref[...], 0.0)

    # ---- fusion: single matmul over lane-concatenated embeddings ----
    cat = jnp.concatenate([img_emb, txt_emb], axis=-1)                 # [B, 3E]
    fused = (jnp.dot(cat.astype(bf16), fw_ref[...],
                     preferred_element_type=f32) + fb_ref[...])        # [B, F]

    # ---- L2 normalize (torch.nn.functional.normalize: clamp the NORM) ----
    norm = jnp.sqrt(jnp.sum(fused * fused, axis=-1, keepdims=True))
    out = fused / jnp.maximum(norm, 1e-12)
    emb_ref[...] = out

    # ---- similarity against the whole (pre-transposed, padded) index ----
    sc_ref[...] = jnp.dot(out.astype(bf16), idx_ref[...],
                          preferred_element_type=f32)                  # [B, N_pad]


def _full_spec(shape):
    return pl.BlockSpec(tuple(shape), lambda: (0,) * len(shape))


def pallas_encode_and_score(img2d, txt_pool, p, index_t):
    B = txt_pool.shape[0]
    F = p["fusion_w"].shape[1]
    n_pad = index_t.shape[1]
    args = (
        img2d, txt_pool,
        p["conv_w3"], p["conv_b"], p["wproj"], p["rpool"], p["img_proj_b"],
        p["txt_w"], p["txt_b"], p["fusion_w"], p["fusion_b"],
        index_t,
    )
    return pl.pallas_call(
        _fused_kernel,
        out_shape=(jax.ShapeDtypeStruct((B, F), jnp.float32),
                   jax.ShapeDtypeStruct((B, n_pad), jnp.float32)),
        in_specs=[_full_spec(a.shape) for a in args],
        out_specs=(_full_spec((B, F)), _full_spec((B, n_pad))),
    )(*args)


# -----------------------------------------------------------------------------
# Offline preparation (done once at model-load time in deployment)
# -----------------------------------------------------------------------------
def prepare_encoder_params(p, *, B, H, W, cin):
    """Repack weights for the fused kernel.  NOTE: rpool bakes in B/H/W; a
    different runtime batch size requires re-running this prep."""
    Hp, Wp = H + 2, W + 2
    rows = (B - 1) * Hp + H
    conv_k = p["image"]["conv_k"]                       # [3, 3, Cin, Cc] (HWIO)
    Cc = conv_k.shape[-1]
    E = p["title"]["proj_w"].shape[0]

    # shift[dw, wp, w] = 1 iff wp == w + dw  ('same'-pad column offset)
    shift = jnp.stack(
        [jnp.pad(jnp.eye(W, dtype=jnp.float32), ((dw, 2 - dw), (0, 0)))
         for dw in range(3)], axis=0)                                  # [3, Wp, W]
    # conv_w3[dh, wp*Cin + c, w*Cc + f] = conv_k[dh, dw, c, f] with wp = w + dw
    conv_w3 = jnp.einsum("epw,decf->dpcwf", shift, conv_k)
    conv_w3 = conv_w3.reshape(3, Wp * cin, W * Cc).astype(jnp.bfloat16)

    conv_b = jnp.tile(p["image"]["conv_b"], W)[None, :].astype(jnp.float32)

    # width-pool folded into the image projection: wproj[w*Cc + c, e] = proj_w[c, e]
    wproj = jnp.tile(p["image"]["proj_w"], (W, 1)).astype(jnp.bfloat16)   # [W*Cc, E]

    r = jnp.arange(rows)[None, :]
    b = jnp.arange(B)[:, None]
    rpool = jnp.where((r >= b * Hp) & (r < b * Hp + H),
                      1.0 / (H * W), 0.0).astype(jnp.bfloat16)            # [B, rows]

    txt_w = jnp.zeros((2 * E, 2 * E), jnp.float32)
    txt_w = txt_w.at[:E, :E].set(p["title"]["proj_w"])
    txt_w = txt_w.at[E:, E:].set(p["desc"]["proj_w"])
    txt_b = jnp.concatenate([p["title"]["proj_b"], p["desc"]["proj_b"]])

    return {
        "conv_w3": conv_w3, "conv_b": conv_b, "wproj": wproj, "rpool": rpool,
        "img_proj_b": p["image"]["proj_b"][None, :].astype(jnp.float32),
        "title_embed": p["title"]["embed"],
        "desc_embed": p["desc"]["embed"],
        "txt_w": txt_w.astype(jnp.bfloat16),
        "txt_b": txt_b[None, :].astype(jnp.float32),
        "fusion_w": p["fusion"]["w"].astype(jnp.bfloat16),
        "fusion_b": p["fusion"]["b"][None, :].astype(jnp.float32),
    }


def prepare_search_index(index_embeddings, *, lane_multiple=128):
    """[N, F] f32 -> pre-transposed, bf16, zero-padded [F, N_pad] (lane-dense)."""
    N, _ = index_embeddings.shape
    n_pad = pl.cdiv(N, lane_multiple) * lane_multiple
    idx_t = jnp.transpose(index_embeddings).astype(jnp.bfloat16)
    idx_t = jnp.pad(idx_t, ((0, 0), (0, n_pad - N)))
    return idx_t, N


# -----------------------------------------------------------------------------
# Full forward: MultimodalNetwork encode + similarity search
# -----------------------------------------------------------------------------
def inference_forward(image, title_ids, desc_ids, enc_params, index_t,
                      *, n_index, top_k=5):
    B, cin, H, W = image.shape
    # TODO(synk): albumentations resize/normalize and the title/description
    # tokenizers are host-side string/PIL ops with no Pallas equivalent; the
    # model takes normalized NCHW images and token ids directly.
    x_nhwc = jnp.transpose(image, (0, 2, 3, 1))
    xp = jnp.pad(x_nhwc, ((0, 0), (1, 1), (1, 1), (0, 0)))        # 'same' padding
    img2d = xp.reshape(B * (H + 2), (W + 2) * cin).astype(jnp.bfloat16)

    ttl_pool = jnp.mean(jnp.take(enc_params["title_embed"], title_ids, axis=0), axis=1)
    dsc_pool = jnp.mean(jnp.take(enc_params["desc_embed"], desc_ids, axis=0), axis=1)
    txt_pool = jnp.concatenate([ttl_pool, dsc_pool], axis=-1).astype(jnp.bfloat16)

    out_emb, scores = pallas_encode_and_score(img2d, txt_pool, enc_params, index_t)
    scores = scores[:, :n_index]
    # TODO(synk): faiss IVF search + refiner + metadata lookup has no Pallas
    # equivalent; exact dot-product scores + top-k stand in for it.
    top_scores, top_idx = jax.lax.top_k(scores, top_k)
    return out_emb, top_scores, top_idx


# -----------------------------------------------------------------------------
# Deterministic parameter construction
# -----------------------------------------------------------------------------
def make_params(key, *, cin=3, conv_c=8, emb=32, vocab=64, fused=32, n_index=10000):
    ks = jax.random.split(key, 8)
    scale = 0.05
    params = {
        "image": {
            "conv_k": scale * jax.random.normal(ks[0], (3, 3, cin, conv_c), jnp.float32),
            "conv_b": jnp.zeros((conv_c,), jnp.float32),
            "proj_w": scale * jax.random.normal(ks[1], (conv_c, emb), jnp.float32),
            "proj_b": jnp.zeros((emb,), jnp.float32),
        },
        "title": {
            "embed": scale * jax.random.normal(ks[2], (vocab, emb), jnp.float32),
            "proj_w": scale * jax.random.normal(ks[3], (emb, emb), jnp.float32),
            "proj_b": jnp.zeros((emb,), jnp.float32),
        },
        "desc": {
            "embed": scale * jax.random.normal(ks[4], (vocab, emb), jnp.float32),
            "proj_w": scale * jax.random.normal(ks[5], (emb, emb), jnp.float32),
            "proj_b": jnp.zeros((emb,), jnp.float32),
        },
        "fusion": {
            "w": scale * jax.random.normal(ks[6], (3 * emb, fused), jnp.float32),
            "b": jnp.zeros((fused,), jnp.float32),
        },
    }
    idx = jax.random.normal(ks[7], (n_index, fused), jnp.float32)
    idx = idx / jnp.linalg.norm(idx, axis=-1, keepdims=True)
    return params, idx


if __name__ == "__main__":
    key = jax.random.PRNGKey(0)
    k_img, k_ttl, k_dsc, k_par = jax.random.split(key, 4)

    B, CIN, H, W = 2, 3, 16, 16
    SEQ, VOCAB = 8, 64
    CONV_C, EMB, FUSED = 8, 32, 32
    N_INDEX, TOP_K = 10000, 5

    image = jax.random.normal(k_img, (B, CIN, H, W), jnp.float32)        # NCHW
    title_ids = jax.random.randint(k_ttl, (B, SEQ), 0, VOCAB, jnp.int32)
    desc_ids = jax.random.randint(k_dsc, (B, SEQ), 0, VOCAB, jnp.int32)

    raw_params, raw_index = make_params(
        k_par, cin=CIN, conv_c=CONV_C, emb=EMB, vocab=VOCAB,
        fused=FUSED, n_index=N_INDEX)

    # one-time "model load" prep (weight repacking + index transpose/pad/cast)
    enc_params = prepare_encoder_params(raw_params, B=B, H=H, W=W, cin=CIN)
    index_t, n_index = prepare_search_index(raw_index)

    fwd = jax.jit(functools.partial(inference_forward, n_index=n_index, top_k=TOP_K))
    out_emb, top_scores, top_idx = fwd(image, title_ids, desc_ids, enc_params, index_t)
    jax.block_until_ready((out_emb, top_scores, top_idx))
    print("KERNEL_OK")
</pallas_src>

<mosaic_0001>
module attributes {stable_mosaic.version = 11 : i64} {
  func.func @_fused_kernel(%arg0: memref<36x54xbf16, #tpu.memory_space<vmem>>, %arg1: memref<2x64xbf16, #tpu.memory_space<vmem>>, %arg2: memref<3x54x128xbf16, #tpu.memory_space<vmem>>, %arg3: memref<1x128xf32, #tpu.memory_space<vmem>>, %arg4: memref<128x32xbf16, #tpu.memory_space<vmem>>, %arg5: memref<2x34xbf16, #tpu.memory_space<vmem>>, %arg6: memref<1x32xf32, #tpu.memory_space<vmem>>, %arg7: memref<64x64xbf16, #tpu.memory_space<vmem>>, %arg8: memref<1x64xf32, #tpu.memory_space<vmem>>, %arg9: memref<96x32xbf16, #tpu.memory_space<vmem>>, %arg10: memref<1x32xf32, #tpu.memory_space<vmem>>, %arg11: memref<32x10112xbf16, #tpu.memory_space<vmem>>, %arg12: memref<2x32xf32, #tpu.memory_space<vmem>>, %arg13: memref<2x10112xf32, #tpu.memory_space<vmem>>) attributes {dimension_semantics = [], scalar_prefetch = 0 : i64, scratch_operands = 0 : i64, tpu.core_type = #tpu.core_type<tc>} {
    %c0 = arith.constant 0 : index
    %c0_0 = arith.constant 0 : index
    %0 = vector.load %arg0[%c0, %c0_0] : memref<36x54xbf16, #tpu.memory_space<vmem>>, vector<34x54xbf16>
    %c0_1 = arith.constant 0 : index
    %c0_2 = arith.constant 0 : index
    %c0_3 = arith.constant 0 : index
    %1 = vector.load %arg2[%c0_1, %c0_2, %c0_3] : memref<3x54x128xbf16, #tpu.memory_space<vmem>>, vector<1x54x128xbf16>
    %2 = vector.shape_cast %1 : vector<1x54x128xbf16> to vector<54x128xbf16>
    %cst = arith.constant dense<0.000000e+00> : vector<34x128xf32>
    %3 = tpu.matmul %0, %2, %cst {dimension_numbers = #tpu.dot_dimension_numbers<[1], [0], [0], [1], [0, 0, 1, 1], [], []>} : vector<34x54xbf16>, vector<54x128xbf16>, vector<34x128xf32> -> vector<34x128xf32>
    %c1 = arith.constant 1 : index
    %c0_4 = arith.constant 0 : index
    %4 = vector.load %arg0[%c1, %c0_4] : memref<36x54xbf16, #tpu.memory_space<vmem>>, vector<34x54xbf16>
    %c1_5 = arith.constant 1 : index
    %c0_6 = arith.constant 0 : index
    %c0_7 = arith.constant 0 : index
    %5 = vector.load %arg2[%c1_5, %c0_6, %c0_7] : memref<3x54x128xbf16, #tpu.memory_space<vmem>>, vector<1x54x128xbf16>
    %6 = vector.shape_cast %5 : vector<1x54x128xbf16> to vector<54x128xbf16>
    %cst_8 = arith.constant dense<0.000000e+00> : vector<34x128xf32>
    %7 = tpu.matmul %4, %6, %cst_8 {dimension_numbers = #tpu.dot_dimension_numbers<[1], [0], [0], [1], [0, 0, 1, 1], [], []>} : vector<34x54xbf16>, vector<54x128xbf16>, vector<34x128xf32> -> vector<34x128xf32>
    %8 = arith.addf %3, %7 : vector<34x128xf32>
    %c2 = arith.constant 2 : index
    %c0_9 = arith.constant 0 : index
    %9 = vector.load %arg0[%c2, %c0_9] : memref<36x54xbf16, #tpu.memory_space<vmem>>, vector<34x54xbf16>
    %c2_10 = arith.constant 2 : index
    %c0_11 = arith.constant 0 : index
    %c0_12 = arith.constant 0 : index
    %10 = vector.load %arg2[%c2_10, %c0_11, %c0_12] : memref<3x54x128xbf16, #tpu.memory_space<vmem>>, vector<1x54x128xbf16>
    %11 = vector.shape_cast %10 : vector<1x54x128xbf16> to vector<54x128xbf16>
    %cst_13 = arith.constant dense<0.000000e+00> : vector<34x128xf32>
    %12 = tpu.matmul %9, %11, %cst_13 {dimension_numbers = #tpu.dot_dimension_numbers<[1], [0], [0], [1], [0, 0, 1, 1], [], []>} : vector<34x54xbf16>, vector<54x128xbf16>, vector<34x128xf32> -> vector<34x128xf32>
    %13 = arith.addf %8, %12 : vector<34x128xf32>
    %c0_14 = arith.constant 0 : index
    %c0_15 = arith.constant 0 : index
    %14 = vector.load %arg3[%c0_14, %c0_15] : memref<1x128xf32, #tpu.memory_space<vmem>>, vector<1x128xf32>
    %15 = vector.broadcast %14 : vector<1x128xf32> to vector<34x128xf32>
    %16 = arith.addf %13, %15 : vector<34x128xf32>
    %cst_16 = arith.constant 0.000000e+00 : f32
    %17 = vector.broadcast %cst_16 : f32 to vector<34x128xf32>
    %18 = arith.maximumf %16, %17 : vector<34x128xf32>
    %19 = arith.truncf %18 : vector<34x128xf32> to vector<34x128xbf16>
    %c0_17 = arith.constant 0 : index
    %c0_18 = arith.constant 0 : index
    %20 = vector.load %arg4[%c0_17, %c0_18] : memref<128x32xbf16, #tpu.memory_space<vmem>>, vector<128x32xbf16>
    %cst_19 = arith.constant dense<0.000000e+00> : vector<34x32xf32>
    %21 = tpu.matmul %19, %20, %cst_19 {dimension_numbers = #tpu.dot_dimension_numbers<[1], [0], [0], [1], [0, 0, 1, 1], [], []>} : vector<34x128xbf16>, vector<128x32xbf16>, vector<34x32xf32> -> vector<34x32xf32>
    %c0_20 = arith.constant 0 : index
    %c0_21 = arith.constant 0 : index
    %22 = vector.load %arg5[%c0_20, %c0_21] : memref<2x34xbf16, #tpu.memory_space<vmem>>, vector<2x34xbf16>
    %23 = arith.truncf %21 : vector<34x32xf32> to vector<34x32xbf16>
    %cst_22 = arith.constant dense<0.000000e+00> : vector<2x32xf32>
    %24 = tpu.matmul %22, %23, %cst_22 {dimension_numbers = #tpu.dot_dimension_numbers<[1], [0], [0], [1], [0, 0, 1, 1], [], []>} : vector<2x34xbf16>, vector<34x32xbf16>, vector<2x32xf32> -> vector<2x32xf32>
    %c0_23 = arith.constant 0 : index
    %c0_24 = arith.constant 0 : index
    %25 = vector.load %arg6[%c0_23, %c0_24] : memref<1x32xf32, #tpu.memory_space<vmem>>, vector<1x32xf32>
    %26 = vector.broadcast %25 : vector<1x32xf32> to vector<2x32xf32>
    %27 = arith.addf %24, %26 : vector<2x32xf32>
    %cst_25 = arith.constant 0.000000e+00 : f32
    %28 = vector.broadcast %cst_25 : f32 to vector<2x32xf32>
    %29 = arith.maximumf %27, %28 : vector<2x32xf32>
    %c0_26 = arith.constant 0 : index
    %c0_27 = arith.constant 0 : index
    %30 = vector.load %arg1[%c0_26, %c0_27] : memref<2x64xbf16, #tpu.memory_space<vmem>>, vector<2x64xbf16>
    %c0_28 = arith.constant 0 : index
    %c0_29 = arith.constant 0 : index
    %31 = vector.load %arg7[%c0_28, %c0_29] : memref<64x64xbf16, #tpu.memory_space<vmem>>, vector<64x64xbf16>
    %cst_30 = arith.constant dense<0.000000e+00> : vector<2x64xf32>
    %32 = tpu.matmul %30, %31, %cst_30 {dimension_numbers = #tpu.dot_dimension_numbers<[1], [0], [0], [1], [0, 0, 1, 1], [], []>} : vector<2x64xbf16>, vector<64x64xbf16>, vector<2x64xf32> -> vector<2x64xf32>
    %c0_31 = arith.constant 0 : index
    %c0_32 = arith.constant 0 : index
    %33 = vector.load %arg8[%c0_31, %c0_32] : memref<1x64xf32, #tpu.memory_space<vmem>>, vector<1x64xf32>
    %34 = vector.broadcast %33 : vector<1x64xf32> to vector<2x64xf32>
    %35 = arith.addf %32, %34 : vector<2x64xf32>
    %cst_33 = arith.constant 0.000000e+00 : f32
    %36 = vector.broadcast %cst_33 : f32 to vector<2x64xf32>
    %37 = arith.maximumf %35, %36 : vector<2x64xf32>
    %38 = tpu.concatenate %29, %37 in 1 : vector<2x32xf32>, vector<2x64xf32> -> vector<2x96xf32>
    %39 = arith.truncf %38 : vector<2x96xf32> to vector<2x96xbf16>
    %c0_34 = arith.constant 0 : index
    %c0_35 = arith.constant 0 : index
    %40 = vector.load %arg9[%c0_34, %c0_35] : memref<96x32xbf16, #tpu.memory_space<vmem>>, vector<96x32xbf16>
    %cst_36 = arith.constant dense<0.000000e+00> : vector<2x32xf32>
    %41 = tpu.matmul %39, %40, %cst_36 {dimension_numbers = #tpu.dot_dimension_numbers<[1], [0], [0], [1], [0, 0, 1, 1], [], []>} : vector<2x96xbf16>, vector<96x32xbf16>, vector<2x32xf32> -> vector<2x32xf32>
    %c0_37 = arith.constant 0 : index
    %c0_38 = arith.constant 0 : index
    %42 = vector.load %arg10[%c0_37, %c0_38] : memref<1x32xf32, #tpu.memory_space<vmem>>, vector<1x32xf32>
    %43 = vector.broadcast %42 : vector<1x32xf32> to vector<2x32xf32>
    %44 = arith.addf %41, %43 : vector<2x32xf32>
    %45 = arith.mulf %44, %44 : vector<2x32xf32>
    %cst_39 = arith.constant dense<0.000000e+00> : vector<2xf32>
    %46 = vector.multi_reduction <add>, %45, %cst_39 [1] : vector<2x32xf32> to vector<2xf32>
    %47 = vector.shape_cast %46 : vector<2xf32> to vector<2x1xf32>
    %48 = math.sqrt %47 : vector<2x1xf32>
    %cst_40 = arith.constant 9.99999996E-13 : f32
    %49 = vector.broadcast %cst_40 : f32 to vector<2x1xf32>
    %50 = arith.maximumf %48, %49 : vector<2x1xf32>
    %51 = vector.broadcast %50 : vector<2x1xf32> to vector<2x32xf32>
    %52 = arith.divf %44, %51 : vector<2x32xf32>
    %c0_41 = arith.constant 0 : index
    %c0_42 = arith.constant 0 : index
    %53 = vector.load %arg12[%c0_41, %c0_42] : memref<2x32xf32, #tpu.memory_space<vmem>>, vector<2x32xf32>
    tpu.vector_store %arg12[%c0_41, %c0_42], %52 {strides = array<i32>} : memref<2x32xf32, #tpu.memory_space<vmem>>, vector<2x32xf32>,
    %54 = arith.truncf %52 : vector<2x32xf32> to vector<2x32xbf16>
    %c0_43 = arith.constant 0 : index
    %c0_44 = arith.constant 0 : index
    %55 = vector.load %arg11[%c0_43, %c0_44] : memref<32x10112xbf16, #tpu.memory_space<vmem>>, vector<32x10112xbf16>
    %cst_45 = arith.constant dense<0.000000e+00> : vector<2x10112xf32>
    %56 = tpu.matmul %54, %55, %cst_45 {dimension_numbers = #tpu.dot_dimension_numbers<[1], [0], [0], [1], [0, 0, 1, 1], [], []>} : vector<2x32xbf16>, vector<32x10112xbf16>, vector<2x10112xf32> -> vector<2x10112xf32>
    %c0_46 = arith.constant 0 : index
    %c0_47 = arith.constant 0 : index
    %57 = vector.load %arg13[%c0_46, %c0_47] : memref<2x10112xf32, #tpu.memory_space<vmem>>, vector<2x10112xf32>
    tpu.vector_store %arg13[%c0_46, %c0_47], %56 {strides = array<i32>} : memref<2x10112xf32, #tpu.memory_space<vmem>>, vector<2x10112xf32>,
    return
  }
}

</mosaic_0001>

<llo_original>
// kernel: inference_forward.1
$region0: #{inference_forward.1}
  #allocation0 [shape = 'u32[]', space=smem, size = 0x4, offset = 0x4, fixed_abs, tag = 'smem constant byte address 0x4 - core index']
  #allocation1 [shape = 'u32[72,128]{1,0:T(1,128)}', space=vmem, size = 0x9000, scoped, tag = 'internal scratch']
  %s0 = inlined_call_operand.vmem [shape: bf16[36,54], index: 0, kind: input, shape index: {}]
  %s1 = inlined_call_operand.vmem [shape: bf16[2,64], index: 1, kind: input, shape index: {}]
  %s2 = inlined_call_operand.vmem [shape: bf16[3,54,128], index: 2, kind: input, shape index: {}]
  %s3 = inlined_call_operand.vmem [shape: f32[1,128], index: 3, kind: input, shape index: {}]
  %s4 = inlined_call_operand.vmem [shape: bf16[128,32], index: 4, kind: input, shape index: {}]
  %s5 = inlined_call_operand.vmem [shape: bf16[2,34], index: 5, kind: input, shape index: {}]
  %s6 = inlined_call_operand.vmem [shape: f32[1,32], index: 6, kind: input, shape index: {}]
  %s7 = inlined_call_operand.vmem [shape: bf16[64,64], index: 7, kind: input, shape index: {}]
  %s8 = inlined_call_operand.vmem [shape: f32[1,64], index: 8, kind: input, shape index: {}]
  %s9 = inlined_call_operand.vmem [shape: bf16[96,32], index: 9, kind: input, shape index: {}]
  %s10 = inlined_call_operand.vmem [shape: f32[1,32], index: 10, kind: input, shape index: {}]
  %s11 = inlined_call_operand.hbm [shape: bf16[32,10112], index: 11, kind: input, shape index: {}]
  %s12 = inlined_call_operand.hbm [shape: f32[2,32], index: 12, kind: output, shape index: {0}]
  %s13 = inlined_call_operand.vmem [shape: f32[2,10112], index: 13, kind: output, shape index: {1}]
  %14 = xla_tuple %s12, %s13
  %s15 = sld [smem:[#allocation0]]
  $region70: #{inference_forward.1} parent=0
    _
  %s17 = ssub.s32 1, %s15
  %s18 = scalar_select 0, %s17, %s15
  $region1: #{inference_forward.1} parent=0
    #allocation2 [shape = 'u8[647168]{0}', space=vmem, size = 0x9e000, scoped, tag = 'input window, operand 11, single buffered']
    #allocation3 [shape = 's32[1]{0}', space=sflag, size = 0x4, scoped, tag = 'scoped memory for inference_forward.1']
    #allocation4 [shape = 's32[1]{0}', space=sflag, size = 0x4, scoped, tag = 'scoped memory for inference_forward.1']
    #allocation5 [shape = 'u8[1024]{0}', space=vmem, size = 0x400, scoped, tag = 'output window, operand 0, single buffered']
    %19 = vsyncpa [#allocation3], 0
    %20 = vsyncpa [#allocation4], 0
    // Predicated region
    $region2: #{inference_forward.1} parent=1 // pred_check
      _
    $region3: #{inference_forward.1} parent=1 // pred_check_branch
      %22 = sbr.rel (0) target = $region5
    $region4: #{inference_forward.1} parent=1 // pred_region
      _
    $region5: #{inference_forward.1} parent=1 // pred_fallthru
      _
    // Predicated region
    $region6: #{inference_forward.1} parent=1 // pred_check
      _
    $region7: #{inference_forward.1} parent=1 // pred_check_branch
      %24 = sbr.rel (0) target = $region9
    $region8: #{inference_forward.1} parent=1 // pred_region
      _
    $region9: #{inference_forward.1} parent=1 // pred_fallthru
      _
    // Predicated region
    $region10: #{inference_forward.1} parent=1 // pred_check
      _
    $region11: #{inference_forward.1} parent=1 // pred_check_branch
      %26 = sbr.rel (0) target = $region13
    $region12: #{inference_forward.1} parent=1 // pred_region
      _
    $region13: #{inference_forward.1} parent=1 // pred_fallthru
      _
    // Predicated region
    $region14: #{inference_forward.1} parent=1 // pred_check
      _
    $region15: #{inference_forward.1} parent=1 // pred_check_branch
      %28 = sbr.rel (0) target = $region17
    $region16: #{inference_forward.1} parent=1 // pred_region
      _
    $region17: #{inference_forward.1} parent=1 // pred_fallthru
      _
    // Predicated region
    $region18: #{inference_forward.1} parent=1 // pred_check
      _
    $region19: #{inference_forward.1} parent=1 // pred_check_branch
      %30 = sbr.rel (0) target = $region21
    $region20: #{inference_forward.1} parent=1 // pred_region
      _
    $region21: #{inference_forward.1} parent=1 // pred_fallthru
      _
    // Predicated region
    $region22: #{inference_forward.1} parent=1 // pred_check
      _
    $region23: #{inference_forward.1} parent=1 // pred_check_branch
      %32 = sbr.rel (0) target = $region25
    $region24: #{inference_forward.1} parent=1 // pred_region
      _
    $region25: #{inference_forward.1} parent=1 // pred_fallthru
      _
    // Predicated region
    $region26: #{inference_forward.1} parent=1 // pred_check
      _
    $region27: #{inference_forward.1} parent=1 // pred_check_branch
      %34 = sbr.rel (0) target = $region29
    $region28: #{inference_forward.1} parent=1 // pred_region
      _
    $region29: #{inference_forward.1} parent=1 // pred_fallthru
      _
    // Predicated region
    $region30: #{inference_forward.1} parent=1 // pred_check
      _
    $region31: #{inference_forward.1} parent=1 // pred_check_branch
      %36 = sbr.rel (0) target = $region33
    $region32: #{inference_forward.1} parent=1 // pred_region
      _
    $region33: #{inference_forward.1} parent=1 // pred_fallthru
      _
    // Predicated region
    $region34: #{inference_forward.1} parent=1 // pred_check
      _
    $region35: #{inference_forward.1} parent=1 // pred_check_branch
      %38 = sbr.rel (0) target = $region37
    $region36: #{inference_forward.1} parent=1 // pred_region
      _
    $region37: #{inference_forward.1} parent=1 // pred_fallthru
      _
    // Predicated region
    $region38: #{inference_forward.1} parent=1 // pred_check
      _
    $region39: #{inference_forward.1} parent=1 // pred_check_branch
      %40 = sbr.rel (0) target = $region41
    $region40: #{inference_forward.1} parent=1 // pred_region
      _
    $region41: #{inference_forward.1} parent=1 // pred_fallthru
      _
    // Predicated region
    $region42: #{inference_forward.1} parent=1 // pred_check
      _
    $region43: #{inference_forward.1} parent=1 // pred_check_branch
      %42 = sbr.rel (0) target = $region45
    $region44: #{inference_forward.1} parent=1 // pred_region
      _
    $region45: #{inference_forward.1} parent=1 // pred_fallthru
      _
    // Predicated region
    $region46: #{inference_forward.1} parent=1 // pred_check
      _
    $region47: #{inference_forward.1} parent=1 // pred_check_branch
      %44 = sbr.rel (0) target = $region49
    $region48: #{inference_forward.1} parent=1 // pred_region
      %46 = vsyncadd [#allocation3], 0
      %s47 = sshll.u32 %s11, 4
      %s48 = int_to_ptr.hbm [resolvable:$true] %s47
      %s49 = sshll.u32 [#allocation2], 4
      %s50 = int_to_ptr.vmem [resolvable:$true] %s49
      %55 = dma.hbm_to_vmem [thread:$0]  %s48, 20224, %s50, [#allocation3], 5056, 5056, 316
    $region49: #{inference_forward.1} parent=1 // pred_fallthru
      _
    // Predicated region
    $region50: #{inference_forward.1} parent=1 // pred_check
      _
    $region51: #{inference_forward.1} parent=1 // pred_check_branch
      %57 = sbr.rel (0) target = $region53
    $region52: #{inference_forward.1} parent=1 // pred_region
      %59 = dma.done [#allocation3], 20224
    $region53: #{inference_forward.1} parent=1 // pred_fallthru
      _
    %v61 = vld [vmem:[%s0] sm:$0xf]
    %v62 = vld [vmem:[%s0 + $0x4] sm:$0xf]
    %v63 = vld [vmem:[%s0 + $0x8] sm:$0xf]
    %v64 = vld [vmem:[%s0 + $0xc] sm:$0xf]
    %v65 = vld [vmem:[%s0 + $0x10] sm:$0x1]
    %v66 = vld [vmem:[%s2] sm:$0xf]
    %v67 = vld [vmem:[%s2 + $0x4] sm:$0xf]
    %v68 = vld [vmem:[%s2 + $0x8] sm:$0xf]
    %v69 = vld [vmem:[%s2 + $0xc] sm:$0xf]
    %v70 = vld [vmem:[%s2 + $0x10] sm:$0xf]
    %v71 = vld [vmem:[%s2 + $0x14] sm:$0xf]
    %v72 = vld [vmem:[%s2 + $0x18] sm:$0x7]
    %v73 = vld [vmem:[%s0 + $0x10] sm:$0x3]
    %s74 = scalar_lea.vmem %s2, 28
    %v75 = vld [vmem:[%s74] sm:$0xf]
    %v76 = vld [vmem:[%s74 + $0x4] sm:$0xf]
    %v77 = vld [vmem:[%s74 + $0x8] sm:$0xf]
    %v78 = vld [vmem:[%s74 + $0xc] sm:$0xf]
    %v79 = vld [vmem:[%s74 + $0x10] sm:$0xf]
    %v80 = vld [vmem:[%s74 + $0x14] sm:$0xf]
    %v81 = vld [vmem:[%s74 + $0x18] sm:$0x7]
    %v87 = vunpack.c.l.b16 %v61
    %v88 = vunpack.c.l.b16 %v62
    %v89 = vunpack.c.l.b16 %v63
    %v90 = vunpack.c.l.b16 %v64
    %v91 = vunpack.c.l.b16 %v73
    %v92 = vpack.c.b16 %v88, %v87
    %v93 = vpack.c.b16 %v90, %v89
    %v94 = vpack.c.b16 %v91, %v91
    %vm95 = vsmask.f32 7424
    %v97 = vshrl.u32 %v92, 16
    %v99 = vshll.u32 %v92, 16
    %v101 = vrot.slane %v99, 1
    %v102 = vor.u32 %v97, %v101
    %v104 = vshll.u32 %v93, 16
    %v106 = vrot.slane %v104, 1
    %v107 = vsel %vm95, %v102, %v106
    %v108 = vshrl.u32 %v93, 16
    %v110 = vor.u32 %v108, %v106
    %v112 = vshll.u32 %v94, 16
    %v114 = vrot.slane %v112, 1
    %v115 = vsel %vm95, %v110, %v114
    %v116 = vshrl.u32 %v94, 16
    %v118 = vor.u32 %v116, %v114
    %v126 = vunpack.c.l.b16 %v75
    %v127 = vunpack.c.l.b16 %v76
    %v128 = vunpack.c.l.b16 %v77
    %v129 = vunpack.c.l.b16 %v78
    %v130 = vunpack.c.l.b16 %v79
    %v131 = vunpack.c.l.b16 %v80
    %v132 = vunpack.c.l.b16 %v81
    %v133 = vpack.c.b16 %v127, %v126
    %v134 = vpack.c.b16 %v129, %v128
    %v135 = vpack.c.b16 %v131, %v130
    %v136 = vpack.c.b16 %v132, %v132
    %vm140 = vcmask 441344
    %v142 = vsel %vm140, %v107, 0
    %v145 = vsel %vm140, %v115, 0
    %v148 = vsel %vm140, %v118, 0
    %vm150 = vcmask 1042432
    %v152 = vsel %vm150, %v136, 0
    %154 = vmatpush.bf16.msra.mxu0 0
    %155 = vmatpush.bf16.msra.mxu0 0
    %156 = vmatpush.bf16.msra.mxu0 0
    %157 = vmatpush.bf16.msra.mxu0 0
    %158 = vmatpush.bf16.msra.mxu0 %v152
    %159 = vmatpush.bf16.msra.mxu0 %v135
    %160 = vmatpush.bf16.msra.mxu0 %v134
    %161 = vmatpush.bf16.msra.mxu0 %v133
    %162 = vmatmul.bf16.gmra.mxu0 %v142
    %v163 = vpop.f32.mrf.mxu0
    %v164 = vadd.f32 0.0, %v163
    %v165 = vpop.f32.mrf.mxu0
    %v166 = vadd.f32 0.0, %v165
    %167 = vmatmul.bf16.gmra.mxu0 %v145
    %v168 = vpop.f32.mrf.mxu0
    %v169 = vadd.f32 0.0, %v168
    %v170 = vpop.f32.mrf.mxu0
    %v171 = vadd.f32 0.0, %v170
    %172 = vmatmul.bf16.gmra.mxu0 %v148
    %v173 = vpop.f32.mrf.mxu0
    %v174 = vadd.f32 0.0, %v173
    %v175 = vpop.f32.mrf.mxu0
    %176 = vdwg.mxu0
    %v178 = vunpack.c.l.b16 %v65
    %v179 = vpack.c.b16 %v178, %v178
    %v187 = vunpack.c.l.b16 %v66
    %v188 = vunpack.c.l.b16 %v67
    %v189 = vunpack.c.l.b16 %v68
    %v190 = vunpack.c.l.b16 %v69
    %v191 = vunpack.c.l.b16 %v70
    %v192 = vunpack.c.l.b16 %v71
    %v193 = vunpack.c.l.b16 %v72
    %v194 = vpack.c.b16 %v188, %v187
    %v195 = vpack.c.b16 %v190, %v189
    %v196 = vpack.c.b16 %v192, %v191
    %v197 = vpack.c.b16 %v193, %v193
    %v201 = vsel %vm140, %v92, 0
    %v203 = vsel %vm140, %v93, 0
    %v206 = vsel %vm140, %v179, 0
    %v209 = vsel %vm150, %v197, 0
    %211 = vmatpush.bf16.msra.mxu0 0
    %212 = vmatpush.bf16.msra.mxu0 0
    %213 = vmatpush.bf16.msra.mxu0 0
    %214 = vmatpush.bf16.msra.mxu0 0
    %215 = vmatpush.bf16.msra.mxu0 %v209
    %216 = vmatpush.bf16.msra.mxu0 %v196
    %217 = vmatpush.bf16.msra.mxu0 %v195
    %218 = vmatpush.bf16.msra.mxu0 %v194
    %219 = vmatmul.bf16.gmra.mxu0 %v201
    %v220 = vpop.f32.mrf.mxu0
    %v221 = vadd.f32 %v164, %v220
    %v222 = vpop.f32.mrf.mxu0
    %v223 = vadd.f32 %v166, %v222
    %224 = vmatmul.bf16.gmra.mxu0 %v203
    %v225 = vpop.f32.mrf.mxu0
    %v226 = vadd.f32 %v169, %v225
    %v227 = vpop.f32.mrf.mxu0
    %v228 = vadd.f32 %v171, %v227
    %229 = vmatmul.bf16.gmra.mxu0 %v206
    %v230 = vpop.f32.mrf.mxu0
    %v231 = vadd.f32 %v174, %v230
    %v232 = vpop.f32.mrf.mxu0
    %233 = vdwg.mxu0
    %v234 = vld [vmem:[%s0] sm:$0xe]
    %s235 = scalar_lea.vmem %s2, 56
    %v236 = vld [vmem:[%s235] sm:$0xf]
    %v237 = vld [vmem:[%s235 + $0x4] sm:$0xf]
    %v238 = vld [vmem:[%s235 + $0x8] sm:$0xf]
    %v239 = vld [vmem:[%s235 + $0xc] sm:$0xf]
    %v240 = vld [vmem:[%s235 + $0x10] sm:$0xf]
    %v241 = vld [vmem:[%s235 + $0x14] sm:$0xf]
    %v242 = vld [vmem:[%s235 + $0x18] sm:$0x7]
    %v244 = vunpack.c.l.b16 %v234
    %v245 = vpack.c.b16 %v88, %v244
    %vm246 = vcmask 1046528
    %v247 = vrot.slane %v245, 1
    %v248 = vrot.slane %v93, 1
    %v249 = vsel %vm246, %v247, %v248
    %v250 = vrot.slane %v94, 1
    %v251 = vsel %vm246, %v248, %v250
    %v259 = vunpack.c.l.b16 %v236
    %v260 = vunpack.c.l.b16 %v237
    %v261 = vunpack.c.l.b16 %v238
    %v262 = vunpack.c.l.b16 %v239
    %v263 = vunpack.c.l.b16 %v240
    %v264 = vunpack.c.l.b16 %v241
    %v265 = vunpack.c.l.b16 %v242
    %v266 = vpack.c.b16 %v260, %v259
    %v267 = vpack.c.b16 %v262, %v261
    %v268 = vpack.c.b16 %v264, %v263
    %v269 = vpack.c.b16 %v265, %v265
    %v274 = vsel %vm140, %v249, 0
    %v277 = vsel %vm140, %v251, 0
    %v280 = vsel %vm140, %v250, 0
    %v283 = vsel %vm150, %v269, 0
    %285 = vmatpush.bf16.msra.mxu0 0
    %286 = vmatpush.bf16.msra.mxu0 0
    %287 = vmatpush.bf16.msra.mxu0 0
    %288 = vmatpush.bf16.msra.mxu0 0
    %289 = vmatpush.bf16.msra.mxu0 %v283
    %290 = vmatpush.bf16.msra.mxu0 %v268
    %291 = vmatpush.bf16.msra.mxu0 %v267
    %292 = vmatpush.bf16.msra.mxu0 %v266
    %293 = vmatmul.bf16.gmra.mxu0 %v274
    %v294 = vpop.f32.mrf.mxu0
    %v295 = vadd.f32 0.0, %v294
    %v296 = vpop.f32.mrf.mxu0
    %v297 = vadd.f32 0.0, %v296
    %298 = vmatmul.bf16.gmra.mxu0 %v277
    %v299 = vpop.f32.mrf.mxu0
    %v300 = vadd.f32 0.0, %v299
    %v301 = vpop.f32.mrf.mxu0
    %v302 = vadd.f32 0.0, %v301
    %303 = vmatmul.bf16.gmra.mxu0 %v280
    %v304 = vpop.f32.mrf.mxu0
    %v305 = vadd.f32 0.0, %v304
    %v306 = vpop.f32.mrf.mxu0
    %307 = vdwg.mxu0
    %v308 = vadd.f32 %v221, %v295
    %v309 = vadd.f32 %v223, %v297
    %v310 = vadd.f32 %v226, %v300
    %v311 = vadd.f32 %v228, %v302
    %v312 = vadd.f32 %v231, %v305
    %v313 = vld [vmem:[%s3] sm:$0x1]
    %v315 = vperm.slane %v313, 0
    %v317 = vadd.f32 %v308, %v315
    %v318 = vadd.f32 %v309, %v315
    %v319 = vadd.f32 %v310, %v315
    %v320 = vadd.f32 %v311, %v315
    %v321 = vadd.f32 %v312, %v315
    %v322 = vmax.f32 %v317, 0.0
    %v323 = vmax.f32 %v318, 0.0
    %v324 = vmax.f32 %v319, 0.0
    %v325 = vmax.f32 %v320, 0.0
    %v326 = vmax.f32 %v321, 0.0
    %v327 = vpack.c.bf16 %v323, %v322
    %v328 = vpack.c.bf16 %v325, %v324
    %v329 = vpack.c.bf16 %v326, %v326
    %v330 = vld [vmem:[%s4] sm:$0xf]
    %v331 = vld [vmem:[%s4 + $0x4] sm:$0xf]
    %v332 = vld [vmem:[%s4 + $0x8] sm:$0xf]
    %v333 = vld [vmem:[%s4 + $0xc] sm:$0xf]
    %v334 = vld [vmem:[%s4 + $0x10] sm:$0xf]
    %v335 = vld [vmem:[%s4 + $0x14] sm:$0xf]
    %v336 = vld [vmem:[%s4 + $0x18] sm:$0xf]
    %v337 = vld [vmem:[%s4 + $0x1c] sm:$0xf]
    %v338 = vld [vmem:[%s4 + $0x20] sm:$0xf]
    %v339 = vld [vmem:[%s4 + $0x24] sm:$0xf]
    %v340 = vld [vmem:[%s4 + $0x28] sm:$0xf]
    %v341 = vld [vmem:[%s4 + $0x2c] sm:$0xf]
    %v342 = vld [vmem:[%s4 + $0x30] sm:$0xf]
    %v343 = vld [vmem:[%s4 + $0x34] sm:$0xf]
    %v344 = vld [vmem:[%s4 + $0x38] sm:$0xf]
    %v345 = vld [vmem:[%s4 + $0x3c] sm:$0xf]
    %v362 = vunpack.c.l.b16 %v330
    %v363 = vunpack.c.l.b16 %v331
    %v364 = vunpack.c.l.b16 %v332
    %v365 = vunpack.c.l.b16 %v333
    %v366 = vunpack.c.l.b16 %v334
    %v367 = vunpack.c.l.b16 %v335
    %v368 = vunpack.c.l.b16 %v336
    %v369 = vunpack.c.l.b16 %v337
    %v370 = vunpack.c.l.b16 %v338
    %v371 = vunpack.c.l.b16 %v339
    %v372 = vunpack.c.l.b16 %v340
    %v373 = vunpack.c.l.b16 %v341
    %v374 = vunpack.c.l.b16 %v342
    %v375 = vunpack.c.l.b16 %v343
    %v376 = vunpack.c.l.b16 %v344
    %v377 = vunpack.c.l.b16 %v345
    %v378 = vpack.c.b16 %v363, %v362
    %v379 = vpack.c.b16 %v365, %v364
    %v380 = vpack.c.b16 %v367, %v366
    %v381 = vpack.c.b16 %v369, %v368
    %v382 = vpack.c.b16 %v371, %v370
    %v383 = vpack.c.b16 %v373, %v372
    %v384 = vpack.c.b16 %v375, %v374
    %v385 = vpack.c.b16 %v377, %v376
    %394 = vmatpush.bf16.msra.mxu0 %v385
    %395 = vmatpush.bf16.msra.mxu0 %v384
    %396 = vmatpush.bf16.msra.mxu0 %v383
    %397 = vmatpush.bf16.msra.mxu0 %v382
    %398 = vmatpush.bf16.msra.mxu0 %v381
    %399 = vmatpush.bf16.msra.mxu0 %v380
    %400 = vmatpush.bf16.msra.mxu0 %v379
    %401 = vmatpush.bf16.msra.mxu0 %v378
    %402 = vmatmul.bf16.gmra.mxu0 %v327
    %v403 = vpop.f32.mrf.mxu0
    %v404 = vadd.f32 0.0, %v403
    %v405 = vpop.f32.mrf.mxu0
    %v406 = vadd.f32 0.0, %v405
    %407 = vmatmul.bf16.gmra.mxu0 %v328
    %v408 = vpop.f32.mrf.mxu0
    %v409 = vadd.f32 0.0, %v408
    %v410 = vpop.f32.mrf.mxu0
    %v411 = vadd.f32 0.0, %v410
    %412 = vmatmul.bf16.gmra.mxu0 %v329
    %v413 = vpop.f32.mrf.mxu0
    %v414 = vadd.f32 0.0, %v413
    %v415 = vpop.f32.mrf.mxu0
    %416 = vdwg.mxu0
    %v417 = vld [vmem:[%s5] sm:$0x1]
    %v418 = vpack.c.bf16 %v406, %v404
    %v419 = vpack.c.bf16 %v411, %v409
    %v420 = vpack.c.bf16 %v414, %v414
    %v421 = vld [vmem:[%s6] sm:$0x1]
    %v423 = vperm.slane %v421, 0
    %vm425 = vcmask 277504
    %v427 = vsel %vm425, %v417, 0
    %vm429 = vcmask 1040384
    %v431 = vsel %vm429, %v420, 0
    %433 = vmatpush.bf16.msra.mxu0 0
    %434 = vmatpush.bf16.msra.mxu0 0
    %435 = vmatpush.bf16.msra.mxu0 0
    %436 = vmatpush.bf16.msra.mxu0 0
    %437 = vmatpush.bf16.msra.mxu0 0
    %438 = vmatpush.bf16.msra.mxu0 %v431
    %439 = vmatpush.bf16.msra.mxu0 %v419
    %440 = vmatpush.bf16.msra.mxu0 %v418
    %441 = vmatmul.bf16.gmra.mxu0 %v427
    %v442 = vpop.f32.mrf.mxu0
    %v443 = vadd.f32 %v423, %v442
    %v444 = vpop.f32.mrf.mxu0
    %445 = vdwg.mxu0
    %v446 = vmax.f32 %v443, 0.0
    %v447 = vld [vmem:[%s1] sm:$0x1]
    %v448 = vld [vmem:[%s7] sm:$0xf]
    %v449 = vld [vmem:[%s7 + $0x4] sm:$0xf]
    %v450 = vld [vmem:[%s7 + $0x8] sm:$0xf]
    %v451 = vld [vmem:[%s7 + $0xc] sm:$0xf]
    %v452 = vld [vmem:[%s7 + $0x10] sm:$0xf]
    %v453 = vld [vmem:[%s7 + $0x14] sm:$0xf]
    %v454 = vld [vmem:[%s7 + $0x18] sm:$0xf]
    %v455 = vld [vmem:[%s7 + $0x1c] sm:$0xf]
    %v456 = vld [vmem:[%s8] sm:$0x1]
    %v458 = vperm.slane %v456, 0
    %v468 = vunpack.c.l.b16 %v448
    %v469 = vunpack.c.l.b16 %v449
    %v470 = vunpack.c.l.b16 %v450
    %v471 = vunpack.c.l.b16 %v451
    %v472 = vunpack.c.l.b16 %v452
    %v473 = vunpack.c.l.b16 %v453
    %v474 = vunpack.c.l.b16 %v454
    %v475 = vunpack.c.l.b16 %v455
    %v476 = vpack.c.b16 %v469, %v468
    %v477 = vpack.c.b16 %v471, %v470
    %v478 = vpack.c.b16 %v473, %v472
    %v479 = vpack.c.b16 %v475, %v474
    %vm484 = vcmask 523264
    %v486 = vsel %vm484, %v447, 0
    %488 = vmatpush.bf16.msra.mxu0 0
    %489 = vmatpush.bf16.msra.mxu0 0
    %490 = vmatpush.bf16.msra.mxu0 0
    %491 = vmatpush.bf16.msra.mxu0 0
    %492 = vmatpush.bf16.msra.mxu0 %v479
    %493 = vmatpush.bf16.msra.mxu0 %v478
    %494 = vmatpush.bf16.msra.mxu0 %v477
    %495 = vmatpush.bf16.msra.mxu0 %v476
    %496 = vmatmul.bf16.gmra.mxu0 %v486
    %v497 = vpop.f32.mrf.mxu0
    %v498 = vadd.f32 %v458, %v497
    %v499 = vpop.f32.mrf.mxu0
    %500 = vdwg.mxu0
    %v501 = vmax.f32 %v498, 0.0
    %503 = vrot.lane.b32.xlu0 %v501, 32
    %v504 = vpop.permute.xlu0 %503
    %vm506 = vcmask 261120
    %v507 = vsel %vm506, %v446, %v504
    %v508 = vpack.c.bf16 %v507, %v507
    %v509 = vld [vmem:[%s9] sm:$0xf]
    %v510 = vld [vmem:[%s9 + $0x4] sm:$0xf]
    %v511 = vld [vmem:[%s9 + $0x8] sm:$0xf]
    %v512 = vld [vmem:[%s9 + $0xc] sm:$0xf]
    %v513 = vld [vmem:[%s9 + $0x10] sm:$0xf]
    %v514 = vld [vmem:[%s9 + $0x14] sm:$0xf]
    %v515 = vld [vmem:[%s9 + $0x18] sm:$0xf]
    %v516 = vld [vmem:[%s9 + $0x1c] sm:$0xf]
    %v517 = vld [vmem:[%s9 + $0x20] sm:$0xf]
    %v518 = vld [vmem:[%s9 + $0x24] sm:$0xf]
    %v519 = vld [vmem:[%s9 + $0x28] sm:$0xf]
    %v520 = vld [vmem:[%s9 + $0x2c] sm:$0xf]
    %v521 = vld [vmem:[%s10] sm:$0x1]
    %v523 = vperm.slane %v521, 0
    %v537 = vunpack.c.l.b16 %v509
    %v538 = vunpack.c.l.b16 %v510
    %v539 = vunpack.c.l.b16 %v511
    %v540 = vunpack.c.l.b16 %v512
    %v541 = vunpack.c.l.b16 %v513
    %v542 = vunpack.c.l.b16 %v514
    %v543 = vunpack.c.l.b16 %v515
    %v544 = vunpack.c.l.b16 %v516
    %v545 = vunpack.c.l.b16 %v517
    %v546 = vunpack.c.l.b16 %v518
    %v547 = vunpack.c.l.b16 %v519
    %v548 = vunpack.c.l.b16 %v520
    %v549 = vpack.c.b16 %v538, %v537
    %v550 = vpack.c.b16 %v540, %v539
    %v551 = vpack.c.b16 %v542, %v541
    %v552 = vpack.c.b16 %v544, %v543
    %v553 = vpack.c.b16 %v546, %v545
    %v554 = vpack.c.b16 %v548, %v547
    %vm561 = vcmask 785408
    %v563 = vsel %vm561, %v508, 0
    %565 = vmatpush.bf16.msra.mxu0 0
    %566 = vmatpush.bf16.msra.mxu0 0
    %567 = vmatpush.bf16.msra.mxu0 %v554
    %568 = vmatpush.bf16.msra.mxu0 %v553
    %569 = vmatpush.bf16.msra.mxu0 %v552
    %570 = vmatpush.bf16.msra.mxu0 %v551
    %571 = vmatpush.bf16.msra.mxu0 %v550
    %572 = vmatpush.bf16.msra.mxu0 %v549
    %573 = vmatmul.bf16.gmra.mxu0 %v563
    %v574 = vpop.f32.mrf.mxu0
    %v575 = vadd.f32 %v523, %v574
    %v576 = vpop.f32.mrf.mxu0
    %577 = vdwg.mxu0
    %v578 = vmul.f32 %v575, %v575
    %vm579 = vcmask 254976
    %v580 = vsel %vm579, %v578, 0.0
    %581 = vadd.xlane.f32.xlu0 %v580
    %v582 = vpop.xlane.xlu0 %581
    %v583 = vrsqrt.pop %v582
    %v584 = vmul.f32 %v583, %v582
    %v585 = vmul.f32 %v584, %v583
    %v586 = vmul.f32 0.5, %v585
    %v587 = vsub.f32 1.5, %v586
    %v588 = vmul.f32 %v583, %v587
    %v589 = vmul.f32 %v582, %v588
    %vm590 = vcmp.eq.f32.partialorder %v582, inf
    %v591 = vsel %vm590, %v582, %v589
    %vm592 = vcmp.eq.f32.partialorder %v582, 0.0
    %v593 = vand.u32 %v582, 2147483648
    %v594 = vsel %vm592, %v593, %v591
    %v595 = vmax.f32 %v594, 1e-12
    %v596 = vrcp.pop %v595
    %v597 = vmul.f32 %v595, %v596
    %v598 = vsub.f32 1.0, %v597
    %v599 = vmul.f32 %v596, %v598
    %v600 = vadd.f32 %v596, %v599
    %vm601 = vweird.f32 %v595
    %vm602 = vweird.f32 %v596
    %vm603 = vmor %vm601, %vm602
    %v604 = vsel %vm603, %v596, %v600
    %v605 = vand.u32 2147483647, %v595
    %vm606 = vcmp.eq.f32.partialorder %v605, 8.507059e+37
    %v607 = vand.u32 %v595, 2147483648
    %v608 = vor.u32 1.1754944e-38, %v607
    %v609 = vsel %vm606, %v608, %v604
    %v610 = vmul.f32 %v575, %v609
    %611 = vst.msk [vmem:[#allocation5] sm:$0x3] %vm579, %v610
    %v612 = vpack.c.bf16 %v610, %v610
    %v613 = vld [vmem:[#allocation2] sm:$0xff]
    %v614 = vld [vmem:[#allocation2 + $0x8] sm:$0xff]
    %v615 = vld [vmem:[#allocation2 + $0x10] sm:$0xff]
    %v616 = vld [vmem:[#allocation2 + $0x18] sm:$0xff]
    %v617 = vld [vmem:[#allocation2 + $0x20] sm:$0xff]
    %v618 = vld [vmem:[#allocation2 + $0x28] sm:$0xff]
    %v619 = vld [vmem:[#allocation2 + $0x30] sm:$0xff]
    %v620 = vld [vmem:[#allocation2 + $0x38] sm:$0xff]
    %v621 = vld [vmem:[#allocation2 + $0x40] sm:$0xff]
    %v622 = vld [vmem:[#allocation2 + $0x48] sm:$0xff]
    %v623 = vld [vmem:[#allocation2 + $0x50] sm:$0xff]
    %v624 = vld [vmem:[#allocation2 + $0x58] sm:$0xff]
    %v625 = vld [vmem:[#allocation2 + $0x60] sm:$0xff]
    %v626 = vld [vmem:[#allocation2 + $0x68] sm:$0xff]
    %v627 = vld [vmem:[#allocation2 + $0x70] sm:$0xff]
    %v628 = vld [vmem:[#allocation2 + $0x78] sm:$0xff]
    %v629 = vld [vmem:[#allocation2 + $0x80] sm:$0xff]
    %v630 = vld [vmem:[#allocation2 + $0x88] sm:$0xff]
    %v631 = vld [vmem:[#allocation2 + $0x90] sm:$0xff]
    %v632 = vld [vmem:[#allocation2 + $0x98] sm:$0xff]
    %v633 = vld [vmem:[#allocation2 + $0xa0] sm:$0xff]
    %v634 = vld [vmem:[#allocation2 + $0xa8] sm:$0xff]
    %v635 = vld [vmem:[#allocation2 + $0xb0] sm:$0xff]
    %v636 = vld [vmem:[#allocation2 + $0xb8] sm:$0xff]
    %v637 = vld [vmem:[#allocation2 + $0xc0] sm:$0xff]
    %v638 = vld [vmem:[#allocation2 + $0xc8] sm:$0xff]
    %v639 = vld [vmem:[#allocation2 + $0xd0] sm:$0xff]
    %v640 = vld [vmem:[#allocation2 + $0xd8] sm:$0xff]
    %v641 = vld [vmem:[#allocation2 + $0xe0] sm:$0xff]
    %v642 = vld [vmem:[#allocation2 + $0xe8] sm:$0xff]
    %v643 = vld [vmem:[#allocation2 + $0xf0] sm:$0xff]
    %v644 = vld [vmem:[#allocation2 + $0xf8] sm:$0xff]
    %v645 = vld [vmem:[#allocation2 + $0x100] sm:$0xff]
    %v646 = vld [vmem:[#allocation2 + $0x108] sm:$0xff]
    %v647 = vld [vmem:[#allocation2 + $0x110] sm:$0xff]
    %v648 = vld [vmem:[#allocation2 + $0x118] sm:$0xff]
    %v649 = vld [vmem:[#allocation2 + $0x120] sm:$0xff]
    %v650 = vld [vmem:[#allocation2 + $0x128] sm:$0xff]
    %v651 = vld [vmem:[#allocation2 + $0x130] sm:$0xff]
    %v652 = vld [vmem:[#allocation2 + $0x138] sm:$0xf]
    %v653 = vld [vmem:[#allocation2 + $0x13c] sm:$0xff]
    %v654 = vld [vmem:[#allocation2 + $0x144] sm:$0xff]
    %v655 = vld [vmem:[#allocation2 + $0x14c] sm:$0xff]
    %v656 = vld [vmem:[#allocation2 + $0x154] sm:$0xff]
    %v657 = vld [vmem:[#allocation2 + $0x15c] sm:$0xff]
    %v658 = vld [vmem:[#allocation2 + $0x164] sm:$0xff]
    %v659 = vld [vmem:[#allocation2 + $0x16c] sm:$0xff]
    %v660 = vld [vmem:[#allocation2 + $0x174] sm:$0xff]
    %v661 = vld [vmem:[#allocation2 + $0x17c] sm:$0xff]
    %v662 = vld [vmem:[#allocation2 + $0x184] sm:$0xff]
    %v663 = vld [vmem:[#allocation2 + $0x18c] sm:$0xff]
    %v664 = vld [vmem:[#allocation2 + $0x194] sm:$0xff]
    %v665 = vld [vmem:[#allocation2 + $0x19c] sm:$0xff]
    %v666 = vld [vmem:[#allocation2 + $0x1a4] sm:$0xff]
    %v667 = vld [vmem:[#allocation2 + $0x1ac] sm:$0xff]
    %v668 = vld [vmem:[#allocation2 + $0x1b4] sm:$0xff]
    %v669 = vld [vmem:[#allocation2 + $0x1bc] sm:$0xff]
    %v670 = vld [vmem:[#allocation2 + $0x1c4] sm:$0xff]
    %v671 = vld [vmem:[#allocation2 + $0x1cc] sm:$0xff]
    %v672 = vld [vmem:[#allocation2 + $0x1d4] sm:$0xff]
    %v673 = vld [vmem:[#allocation2 + $0x1dc] sm:$0xff]
    %v674 = vld [vmem:[#allocation2 + $0x1e4] sm:$0xff]
    %v675 = vld [vmem:[#allocation2 + $0x1ec] sm:$0xff]
    %v676 = vld [vmem:[#allocation2 + $0x1f4] sm:$0xff]
    %v677 = vld [vmem:[#allocation2 + $0x1fc] sm:$0xff]
    %v678 = vld [vmem:[#allocation2 + $0x204] sm:$0xff]
    %v679 = vld [vmem:[#allocation2 + $0x20c] sm:$0xff]
    %v680 = vld [vmem:[#allocation2 + $0x214] sm:$0xff]
    %v681 = vld [vmem:[#allocation2 + $0x21c] sm:$0xff]
    %v682 = vld [vmem:[#allocation2 + $0x224] sm:$0xff]
    %v683 = vld [vmem:[#allocation2 + $0x22c] sm:$0xff]
    %v684 = vld [vmem:[#allocation2 + $0x234] sm:$0xff]
    %v685 = vld [vmem:[#allocation2 + $0x23c] sm:$0xff]
    %v686 = vld [vmem:[#allocation2 + $0x244] sm:$0xff]
    %v687 = vld [vmem:[#allocation2 + $0x24c] sm:$0xff]
    %v688 = vld [vmem:[#allocation2 + $0x254] sm:$0xff]
    %v689 = vld [vmem:[#allocation2 + $0x25c] sm:$0xff]
    %v690 = vld [vmem:[#allocation2 + $0x264] sm:$0xff]
    %v691 = vld [vmem:[#allocation2 + $0x26c] sm:$0xff]
    %v692 = vld [vmem:[#allocation2 + $0x274] sm:$0xf]
    %v693 = vld [vmem:[#allocation2 + $0x278] sm:$0xff]
    %v694 = vld [vmem:[#allocation2 + $0x280] sm:$0xff]
    %v695 = vld [vmem:[#allocation2 + $0x288] sm:$0xff]
    %v696 = vld [vmem:[#allocation2 + $0x290] sm:$0xff]
    %v697 = vld [vmem:[#allocation2 + $0x298] sm:$0xff]
    %v698 = vld [vmem:[#allocation2 + $0x2a0] sm:$0xff]
    %v699 = vld [vmem:[#allocation2 + $0x2a8] sm:$0xff]
    %v700 = vld [vmem:[#allocation2 + $0x2b0] sm:$0xff]
    %v701 = vld [vmem:[#allocation2 + $0x2b8] sm:$0xff]
    %v702 = vld [vmem:[#allocation2 + $0x2c0] sm:$0xff]
    %v703 = vld [vmem:[#allocation2 + $0x2c8] sm:$0xff]
    %v704 = vld [vmem:[#allocation2 + $0x2d0] sm:$0xff]
    %v705 = vld [vmem:[#allocation2 + $0x2d8] sm:$0xff]
    %v706 = vld [vmem:[#allocation2 + $0x2e0] sm:$0xff]
    %v707 = vld [vmem:[#allocation2 + $0x2e8] sm:$0xff]
    %v708 = vld [vmem:[#allocation2 + $0x2f0] sm:$0xff]
    %v709 = vld [vmem:[#allocation2 + $0x2f8] sm:$0xff]
    %v710 = vld [vmem:[#allocation2 + $0x300] sm:$0xff]
    %v711 = vld [vmem:[#allocation2 + $0x308] sm:$0xff]
    %v712 = vld [vmem:[#allocation2 + $0x310] sm:$0xff]
    %v713 = vld [vmem:[#allocation2 + $0x318] sm:$0xff]
    %v714 = vld [vmem:[#allocation2 + $0x320] sm:$0xff]
    %v715 = vld [vmem:[#allocation2 + $0x328] sm:$0xff]
    %v716 = vld [vmem:[#allocation2 + $0x330] sm:$0xff]
    %v717 = vld [vmem:[#allocation2 + $0x338] sm:$0xff]
    %v718 = vld [vmem:[#allocation2 + $0x340] sm:$0xff]
    %v719 = vld [vmem:[#allocation2 + $0x348] sm:$0xff]
    %v720 = vld [vmem:[#allocation2 + $0x350] sm:$0xff]
    %v721 = vld [vmem:[#allocation2 + $0x358] sm:$0xff]
    %v722 = vld [vmem:[#allocation2 + $0x360] sm:$0xff]
    %v723 = vld [vmem:[#allocation2 + $0x368] sm:$0xff]
    %v724 = vld [vmem:[#allocation2 + $0x370] sm:$0xff]
    %v725 = vld [vmem:[#allocation2 + $0x378] sm:$0xff]
    %v726 = vld [vmem:[#allocation2 + $0x380] sm:$0xff]
    %v727 = vld [vmem:[#allocation2 + $0x388] sm:$0xff]
    %v728 = vld [vmem:[#allocation2 + $0x390] sm:$0xff]
    %v729 = vld [vmem:[#allocation2 + $0x398] sm:$0xff]
    %v730 = vld [vmem:[#allocation2 + $0x3a0] sm:$0xff]
    %v731 = vld [vmem:[#allocation2 + $0x3a8] sm:$0xff]
    %v732 = vld [vmem:[#allocation2 + $0x3b0] sm:$0xf]
    %v733 = vld [vmem:[#allocation2 + $0x3b4] sm:$0xff]
    %v734 = vld [vmem:[#allocation2 + $0x3bc] sm:$0xff]
    %v735 = vld [vmem:[#allocation2 + $0x3c4] sm:$0xff]
    %v736 = vld [vmem:[#allocation2 + $0x3cc] sm:$0xff]
    %v737 = vld [vmem:[#allocation2 + $0x3d4] sm:$0xff]
    %v738 = vld [vmem:[#allocation2 + $0x3dc] sm:$0xff]
    %v739 = vld [vmem:[#allocation2 + $0x3e4] sm:$0xff]
    %v740 = vld [vmem:[#allocation2 + $0x3ec] sm:$0xff]
    %v741 = vld [vmem:[#allocation2 + $0x3f4] sm:$0xff]
    %v742 = vld [vmem:[#allocation2 + $0x3fc] sm:$0xff]
    %v743 = vld [vmem:[#allocation2 + $0x404] sm:$0xff]
    %v744 = vld [vmem:[#allocation2 + $0x40c] sm:$0xff]
    %v745 = vld [vmem:[#allocation2 + $0x414] sm:$0xff]
    %v746 = vld [vmem:[#allocation2 + $0x41c] sm:$0xff]
    %v747 = vld [vmem:[#allocation2 + $0x424] sm:$0xff]
    %v748 = vld [vmem:[#allocation2 + $0x42c] sm:$0xff]
    %v749 = vld [vmem:[#allocation2 + $0x434] sm:$0xff]
    %v750 = vld [vmem:[#allocation2 + $0x43c] sm:$0xff]
    %v751 = vld [vmem:[#allocation2 + $0x444] sm:$0xff]
    %v752 = vld [vmem:[#allocation2 + $0x44c] sm:$0xff]
    %v753 = vld [vmem:[#allocation2 + $0x454] sm:$0xff]
    %v754 = vld [vmem:[#allocation2 + $0x45c] sm:$0xff]
    %v755 = vld [vmem:[#allocation2 + $0x464] sm:$0xff]
    %v756 = vld [vmem:[#allocation2 + $0x46c] sm:$0xff]
    %v757 = vld [vmem:[#allocation2 + $0x474] sm:$0xff]
    %v758 = vld [vmem:[#allocation2 + $0x47c] sm:$0xff]
    %v759 = vld [vmem:[#allocation2 + $0x484] sm:$0xff]
    %v760 = vld [vmem:[#allocation2 + $0x48c] sm:$0xff]
    %v761 = vld [vmem:[#allocation2 + $0x494] sm:$0xff]
    %v762 = vld [vmem:[#allocation2 + $0x49c] sm:$0xff]
    %v763 = vld [vmem:[#allocation2 + $0x4a4] sm:$0xff]
    %v764 = vld [vmem:[#allocation2 + $0x4ac] sm:$0xff]
    %v765 = vld [vmem:[#allocation2 + $0x4b4] sm:$0xff]
    %v766 = vld [vmem:[#allocation2 + $0x4bc] sm:$0xff]
    %v767 = vld [vmem:[#allocation2 + $0x4c4] sm:$0xff]
    %v768 = vld [vmem:[#allocation2 + $0x4cc] sm:$0xff]
    %v769 = vld [vmem:[#allocation2 + $0x4d4] sm:$0xff]
    %v770 = vld [vmem:[#allocation2 + $0x4dc] sm:$0xff]
    %v771 = vld [vmem:[#allocation2 + $0x4e4] sm:$0xff]
    %v772 = vld [vmem:[#allocation2 + $0x4ec] sm:$0xf]
    %v933 = vunpack.c.l.b16 %v613
    %v934 = vunpack.c.h.b16 %v613
    %v935 = vunpack.c.l.b16 %v614
    %v936 = vunpack.c.h.b16 %v614
    %v937 = vunpack.c.l.b16 %v615
    %v938 = vunpack.c.h.b16 %v615
    %v939 = vunpack.c.l.b16 %v616
    %v940 = vunpack.c.h.b16 %v616
    %v941 = vunpack.c.l.b16 %v617
    %v942 = vunpack.c.h.b16 %v617
    %v943 = vunpack.c.l.b16 %v618
    %v944 = vunpack.c.h.b16 %v618
    %v945 = vunpack.c.l.b16 %v619
    %v946 = vunpack.c.h.b16 %v619
    %v947 = vunpack.c.l.b16 %v620
    %v948 = vunpack.c.h.b16 %v620
    %v949 = vunpack.c.l.b16 %v621
    %v950 = vunpack.c.h.b16 %v621
    %v951 = vunpack.c.l.b16 %v622
    %v952 = vunpack.c.h.b16 %v622
    %v953 = vunpack.c.l.b16 %v623
    %v954 = vunpack.c.h.b16 %v623
    %v955 = vunpack.c.l.b16 %v624
    %v956 = vunpack.c.h.b16 %v624
    %v957 = vunpack.c.l.b16 %v625
    %v958 = vunpack.c.h.b16 %v625
    %v959 = vunpack.c.l.b16 %v626
    %v960 = vunpack.c.h.b16 %v626
    %v961 = vunpack.c.l.b16 %v627
    %v962 = vunpack.c.h.b16 %v627
    %v963 = vunpack.c.l.b16 %v628
    %v964 = vunpack.c.h.b16 %v628
    %v965 = vunpack.c.l.b16 %v629
    %v966 = vunpack.c.h.b16 %v629
    %v967 = vunpack.c.l.b16 %v630
    %v968 = vunpack.c.h.b16 %v630
    %v969 = vunpack.c.l.b16 %v631
    %v970 = vunpack.c.h.b16 %v631
    %v971 = vunpack.c.l.b16 %v632
    %v972 = vunpack.c.h.b16 %v632
    %v973 = vunpack.c.l.b16 %v633
    %v974 = vunpack.c.h.b16 %v633
    %v975 = vunpack.c.l.b16 %v634
    %v976 = vunpack.c.h.b16 %v634
    %v977 = vunpack.c.l.b16 %v635
    %v978 = vunpack.c.h.b16 %v635
    %v979 = vunpack.c.l.b16 %v636
    %v980 = vunpack.c.h.b16 %v636
    %v981 = vunpack.c.l.b16 %v637
    %v982 = vunpack.c.h.b16 %v637
    %v983 = vunpack.c.l.b16 %v638
    %v984 = vunpack.c.h.b16 %v638
    %v985 = vunpack.c.l.b16 %v639
    %v986 = vunpack.c.h.b16 %v639
    %v987 = vunpack.c.l.b16 %v640
    %v988 = vunpack.c.h.b16 %v640
    %v989 = vunpack.c.l.b16 %v641
    %v990 = vunpack.c.h.b16 %v641
    %v991 = vunpack.c.l.b16 %v642
    %v992 = vunpack.c.h.b16 %v642
    %v993 = vunpack.c.l.b16 %v643
    %v994 = vunpack.c.h.b16 %v643
    %v995 = vunpack.c.l.b16 %v644
    %v996 = vunpack.c.h.b16 %v644
    %v997 = vunpack.c.l.b16 %v645
    %v998 = vunpack.c.h.b16 %v645
    %v999 = vunpack.c.l.b16 %v646
    %v1000 = vunpack.c.h.b16 %v646
    %v1001 = vunpack.c.l.b16 %v647
    %v1002 = vunpack.c.h.b16 %v647
    %v1003 = vunpack.c.l.b16 %v648
    %v1004 = vunpack.c.h.b16 %v648
    %v1005 = vunpack.c.l.b16 %v649
    %v1006 = vunpack.c.h.b16 %v649
    %v1007 = vunpack.c.l.b16 %v650
    %v1008 = vunpack.c.h.b16 %v650
    %v1009 = vunpack.c.l.b16 %v651
    %v1010 = vunpack.c.h.b16 %v651
    %v1011 = vunpack.c.l.b16 %v652
    %v1012 = vunpack.c.l.b16 %v653
    %v1013 = vunpack.c.h.b16 %v653
    %v1014 = vunpack.c.l.b16 %v654
    %v1015 = vunpack.c.h.b16 %v654
    %v1016 = vunpack.c.l.b16 %v655
    %v1017 = vunpack.c.h.b16 %v655
    %v1018 = vunpack.c.l.b16 %v656
    %v1019 = vunpack.c.h.b16 %v656
    %v1020 = vunpack.c.l.b16 %v657
    %v1021 = vunpack.c.h.b16 %v657
    %v1022 = vunpack.c.l.b16 %v658
    %v1023 = vunpack.c.h.b16 %v658
    %v1024 = vunpack.c.l.b16 %v659
    %v1025 = vunpack.c.h.b16 %v659
    %v1026 = vunpack.c.l.b16 %v660
    %v1027 = vunpack.c.h.b16 %v660
    %v1028 = vunpack.c.l.b16 %v661
    %v1029 = vunpack.c.h.b16 %v661
    %v1030 = vunpack.c.l.b16 %v662
    %v1031 = vunpack.c.h.b16 %v662
    %v1032 = vunpack.c.l.b16 %v663
    %v1033 = vunpack.c.h.b16 %v663
    %v1034 = vunpack.c.l.b16 %v664
    %v1035 = vunpack.c.h.b16 %v664
    %v1036 = vunpack.c.l.b16 %v665
    %v1037 = vunpack.c.h.b16 %v665
    %v1038 = vunpack.c.l.b16 %v666
    %v1039 = vunpack.c.h.b16 %v666
    %v1040 = vunpack.c.l.b16 %v667
    %v1041 = vunpack.c.h.b16 %v667
    %v1042 = vunpack.c.l.b16 %v668
    %v1043 = vunpack.c.h.b16 %v668
    %v1044 = vunpack.c.l.b16 %v669
    %v1045 = vunpack.c.h.b16 %v669
    %v1046 = vunpack.c.l.b16 %v670
    %v1047 = vunpack.c.h.b16 %v670
    %v1048 = vunpack.c.l.b16 %v671
    %v1049 = vunpack.c.h.b16 %v671
    %v1050 = vunpack.c.l.b16 %v672
    %v1051 = vunpack.c.h.b16 %v672
    %v1052 = vunpack.c.l.b16 %v673
    %v1053 = vunpack.c.h.b16 %v673
    %v1054 = vunpack.c.l.b16 %v674
    %v1055 = vunpack.c.h.b16 %v674
    %v1056 = vunpack.c.l.b16 %v675
    %v1057 = vunpack.c.h.b16 %v675
    %v1058 = vunpack.c.l.b16 %v676
    %v1059 = vunpack.c.h.b16 %v676
    %v1060 = vunpack.c.l.b16 %v677
    %v1061 = vunpack.c.h.b16 %v677
    %v1062 = vunpack.c.l.b16 %v678
    %v1063 = vunpack.c.h.b16 %v678
    %v1064 = vunpack.c.l.b16 %v679
    %v1065 = vunpack.c.h.b16 %v679
    %v1066 = vunpack.c.l.b16 %v680
    %v1067 = vunpack.c.h.b16 %v680
    %v1068 = vunpack.c.l.b16 %v681
    %v1069 = vunpack.c.h.b16 %v681
    %v1070 = vunpack.c.l.b16 %v682
    %v1071 = vunpack.c.h.b16 %v682
    %v1072 = vunpack.c.l.b16 %v683
    %v1073 = vunpack.c.h.b16 %v683
    %v1074 = vunpack.c.l.b16 %v684
    %v1075 = vunpack.c.h.b16 %v684
    %v1076 = vunpack.c.l.b16 %v685
    %v1077 = vunpack.c.h.b16 %v685
    %v1078 = vunpack.c.l.b16 %v686
    %v1079 = vunpack.c.h.b16 %v686
    %v1080 = vunpack.c.l.b16 %v687
    %v1081 = vunpack.c.h.b16 %v687
    %v1082 = vunpack.c.l.b16 %v688
    %v1083 = vunpack.c.h.b16 %v688
    %v1084 = vunpack.c.l.b16 %v689
    %v1085 = vunpack.c.h.b16 %v689
    %v1086 = vunpack.c.l.b16 %v690
    %v1087 = vunpack.c.h.b16 %v690
    %v1088 = vunpack.c.l.b16 %v691
    %v1089 = vunpack.c.h.b16 %v691
    %v1090 = vunpack.c.l.b16 %v692
    %v1091 = vunpack.c.l.b16 %v693
    %v1092 = vunpack.c.h.b16 %v693
    %v1093 = vunpack.c.l.b16 %v694
    %v1094 = vunpack.c.h.b16 %v694
    %v1095 = vunpack.c.l.b16 %v695
    %v1096 = vunpack.c.h.b16 %v695
    %v1097 = vunpack.c.l.b16 %v696
    %v1098 = vunpack.c.h.b16 %v696
    %v1099 = vunpack.c.l.b16 %v697
    %v1100 = vunpack.c.h.b16 %v697
    %v1101 = vunpack.c.l.b16 %v698
    %v1102 = vunpack.c.h.b16 %v698
    %v1103 = vunpack.c.l.b16 %v699
    %v1104 = vunpack.c.h.b16 %v699
    %v1105 = vunpack.c.l.b16 %v700
    %v1106 = vunpack.c.h.b16 %v700
    %v1107 = vunpack.c.l.b16 %v701
    %v1108 = vunpack.c.h.b16 %v701
    %v1109 = vunpack.c.l.b16 %v702
    %v1110 = vunpack.c.h.b16 %v702
    %v1111 = vunpack.c.l.b16 %v703
    %v1112 = vunpack.c.h.b16 %v703
    %v1113 = vunpack.c.l.b16 %v704
    %v1114 = vunpack.c.h.b16 %v704
    %v1115 = vunpack.c.l.b16 %v705
    %v1116 = vunpack.c.h.b16 %v705
    %v1117 = vunpack.c.l.b16 %v706
    %v1118 = vunpack.c.h.b16 %v706
    %v1119 = vunpack.c.l.b16 %v707
    %v1120 = vunpack.c.h.b16 %v707
    %v1121 = vunpack.c.l.b16 %v708
    %v1122 = vunpack.c.h.b16 %v708
    %v1123 = vunpack.c.l.b16 %v709
    %v1124 = vunpack.c.h.b16 %v709
    %v1125 = vunpack.c.l.b16 %v710
    %v1126 = vunpack.c.h.b16 %v710
    %v1127 = vunpack.c.l.b16 %v711
    %v1128 = vunpack.c.h.b16 %v711
    %v1129 = vunpack.c.l.b16 %v712
    %v1130 = vunpack.c.h.b16 %v712
    %v1131 = vunpack.c.l.b16 %v713
    %v1132 = vunpack.c.h.b16 %v713
    %v1133 = vunpack.c.l.b16 %v714
    %v1134 = vunpack.c.h.b16 %v714
    %v1135 = vunpack.c.l.b16 %v715
    %v1136 = vunpack.c.h.b16 %v715
    %v1137 = vunpack.c.l.b16 %v716
    %v1138 = vunpack.c.h.b16 %v716
    %v1139 = vunpack.c.l.b16 %v717
    %v1140 = vunpack.c.h.b16 %v717
    %v1141 = vunpack.c.l.b16 %v718
    %v1142 = vunpack.c.h.b16 %v718
    %v1143 = vunpack.c.l.b16 %v719
    %v1144 = vunpack.c.h.b16 %v719
    %v1145 = vunpack.c.l.b16 %v720
    %v1146 = vunpack.c.h.b16 %v720
    %v1147 = vunpack.c.l.b16 %v721
    %v1148 = vunpack.c.h.b16 %v721
    %v1149 = vunpack.c.l.b16 %v722
    %v1150 = vunpack.c.h.b16 %v722
    %v1151 = vunpack.c.l.b16 %v723
    %v1152 = vunpack.c.h.b16 %v723
    %v1153 = vunpack.c.l.b16 %v724
    %v1154 = vunpack.c.h.b16 %v724
    %v1155 = vunpack.c.l.b16 %v725
    %v1156 = vunpack.c.h.b16 %v725
    %v1157 = vunpack.c.l.b16 %v726
    %v1158 = vunpack.c.h.b16 %v726
    %v1159 = vunpack.c.l.b16 %v727
    %v1160 = vunpack.c.h.b16 %v727
    %v1161 = vunpack.c.l.b16 %v728
    %v1162 = vunpack.c.h.b16 %v728
    %v1163 = vunpack.c.l.b16 %v729
    %v1164 = vunpack.c.h.b16 %v729
    %v1165 = vunpack.c.l.b16 %v730
    %v1166 = vunpack.c.h.b16 %v730
    %v1167 = vunpack.c.l.b16 %v731
    %v1168 = vunpack.c.h.b16 %v731
    %v1169 = vunpack.c.l.b16 %v732
    %v1170 = vunpack.c.l.b16 %v733
    %v1171 = vunpack.c.h.b16 %v733
    %v1172 = vunpack.c.l.b16 %v734
    %v1173 = vunpack.c.h.b16 %v734
    %v1174 = vunpack.c.l.b16 %v735
    %v1175 = vunpack.c.h.b16 %v735
    %v1176 = vunpack.c.l.b16 %v736
    %v1177 = vunpack.c.h.b16 %v736
    %v1178 = vunpack.c.l.b16 %v737
    %v1179 = vunpack.c.h.b16 %v737
    %v1180 = vunpack.c.l.b16 %v738
    %v1181 = vunpack.c.h.b16 %v738
    %v1182 = vunpack.c.l.b16 %v739
    %v1183 = vunpack.c.h.b16 %v739
    %v1184 = vunpack.c.l.b16 %v740
    %v1185 = vunpack.c.h.b16 %v740
    %v1186 = vunpack.c.l.b16 %v741
    %v1187 = vunpack.c.h.b16 %v741
    %v1188 = vunpack.c.l.b16 %v742
    %v1189 = vunpack.c.h.b16 %v742
    %v1190 = vunpack.c.l.b16 %v743
    %v1191 = vunpack.c.h.b16 %v743
    %v1192 = vunpack.c.l.b16 %v744
    %v1193 = vunpack.c.h.b16 %v744
    %v1194 = vunpack.c.l.b16 %v745
    %v1195 = vunpack.c.h.b16 %v745
    %v1196 = vunpack.c.l.b16 %v746
    %v1197 = vunpack.c.h.b16 %v746
    %v1198 = vunpack.c.l.b16 %v747
    %v1199 = vunpack.c.h.b16 %v747
    %v1200 = vunpack.c.l.b16 %v748
    %v1201 = vunpack.c.h.b16 %v748
    %v1202 = vunpack.c.l.b16 %v749
    %v1203 = vunpack.c.h.b16 %v749
    %v1204 = vunpack.c.l.b16 %v750
    %v1205 = vunpack.c.h.b16 %v750
    %v1206 = vunpack.c.l.b16 %v751
    %v1207 = vunpack.c.h.b16 %v751
    %v1208 = vunpack.c.l.b16 %v752
    %v1209 = vunpack.c.h.b16 %v752
    %v1210 = vunpack.c.l.b16 %v753
    %v1211 = vunpack.c.h.b16 %v753
    %v1212 = vunpack.c.l.b16 %v754
    %v1213 = vunpack.c.h.b16 %v754
    %v1214 = vunpack.c.l.b16 %v755
    %v1215 = vunpack.c.h.b16 %v755
    %v1216 = vunpack.c.l.b16 %v756
    %v1217 = vunpack.c.h.b16 %v756
    %v1218 = vunpack.c.l.b16 %v757
    %v1219 = vunpack.c.h.b16 %v757
    %v1220 = vunpack.c.l.b16 %v758
    %v1221 = vunpack.c.h.b16 %v758
    %v1222 = vunpack.c.l.b16 %v759
    %v1223 = vunpack.c.h.b16 %v759
    %v1224 = vunpack.c.l.b16 %v760
    %v1225 = vunpack.c.h.b16 %v760
    %v1226 = vunpack.c.l.b16 %v761
    %v1227 = vunpack.c.h.b16 %v761
    %v1228 = vunpack.c.l.b16 %v762
    %v1229 = vunpack.c.h.b16 %v762
    %v1230 = vunpack.c.l.b16 %v763
    %v1231 = vunpack.c.h.b16 %v763
    %v1232 = vunpack.c.l.b16 %v764
    %v1233 = vunpack.c.h.b16 %v764
    %v1234 = vunpack.c.l.b16 %v765
    %v1235 = vunpack.c.h.b16 %v765
    %v1236 = vunpack.c.l.b16 %v766
    %v1237 = vunpack.c.h.b16 %v766
    %v1238 = vunpack.c.l.b16 %v767
    %v1239 = vunpack.c.h.b16 %v767
    %v1240 = vunpack.c.l.b16 %v768
    %v1241 = vunpack.c.h.b16 %v768
    %v1242 = vunpack.c.l.b16 %v769
    %v1243 = vunpack.c.h.b16 %v769
    %v1244 = vunpack.c.l.b16 %v770
    %v1245 = vunpack.c.h.b16 %v770
    %v1246 = vunpack.c.l.b16 %v771
    %v1247 = vunpack.c.h.b16 %v771
    %v1248 = vunpack.c.l.b16 %v772
    %v1249 = vpack.c.b16 %v1012, %v933
    %v1250 = vpack.c.b16 %v1013, %v934
    %v1251 = vpack.c.b16 %v1014, %v935
    %v1252 = vpack.c.b16 %v1015, %v936
    %v1253 = vpack.c.b16 %v1016, %v937
    %v1254 = vpack.c.b16 %v1017, %v938
    %v1255 = vpack.c.b16 %v1018, %v939
    %v1256 = vpack.c.b16 %v1019, %v940
    %v1257 = vpack.c.b16 %v1020, %v941
    %v1258 = vpack.c.b16 %v1021, %v942
    %v1259 = vpack.c.b16 %v1022, %v943
    %v1260 = vpack.c.b16 %v1023, %v944
    %v1261 = vpack.c.b16 %v1024, %v945
    %v1262 = vpack.c.b16 %v1025, %v946
    %v1263 = vpack.c.b16 %v1026, %v947
    %v1264 = vpack.c.b16 %v1027, %v948
    %v1265 = vpack.c.b16 %v1028, %v949
    %v1266 = vpack.c.b16 %v1029, %v950
    %v1267 = vpack.c.b16 %v1030, %v951
    %v1268 = vpack.c.b16 %v1031, %v952
    %v1269 = vpack.c.b16 %v1032, %v953
    %v1270 = vpack.c.b16 %v1033, %v954
    %v1271 = vpack.c.b16 %v1034, %v955
    %v1272 = vpack.c.b16 %v1035, %v956
    %v1273 = vpack.c.b16 %v1036, %v957
    %v1274 = vpack.c.b16 %v1037, %v958
    %v1275 = vpack.c.b16 %v1038, %v959
    %v1276 = vpack.c.b16 %v1039, %v960
    %v1277 = vpack.c.b16 %v1040, %v961
    %v1278 = vpack.c.b16 %v1041, %v962
    %v1279 = vpack.c.b16 %v1042, %v963
    %v1280 = vpack.c.b16 %v1043, %v964
    %v1281 = vpack.c.b16 %v1044, %v965
    %v1282 = vpack.c.b16 %v1045, %v966
    %v1283 = vpack.c.b16 %v1046, %v967
    %v1284 = vpack.c.b16 %v1047, %v968
    %v1285 = vpack.c.b16 %v1048, %v969
    %v1286 = vpack.c.b16 %v1049, %v970
    %v1287 = vpack.c.b16 %v1050, %v971
    %v1288 = vpack.c.b16 %v1051, %v972
    %v1289 = vpack.c.b16 %v1052, %v973
    %v1290 = vpack.c.b16 %v1053, %v974
    %v1291 = vpack.c.b16 %v1054, %v975
    %v1292 = vpack.c.b16 %v1055, %v976
    %v1293 = vpack.c.b16 %v1056, %v977
    %v1294 = vpack.c.b16 %v1057, %v978
    %v1295 = vpack.c.b16 %v1058, %v979
    %v1296 = vpack.c.b16 %v1059, %v980
    %v1297 = vpack.c.b16 %v1060, %v981
    %v1298 = vpack.c.b16 %v1061, %v982
    %v1299 = vpack.c.b16 %v1062, %v983
    %v1300 = vpack.c.b16 %v1063, %v984
    %v1301 = vpack.c.b16 %v1064, %v985
    %v1302 = vpack.c.b16 %v1065, %v986
    %v1303 = vpack.c.b16 %v1066, %v987
    %v1304 = vpack.c.b16 %v1067, %v988
    %v1305 = vpack.c.b16 %v1068, %v989
    %v1306 = vpack.c.b16 %v1069, %v990
    %v1307 = vpack.c.b16 %v1070, %v991
    %v1308 = vpack.c.b16 %v1071, %v992
    %v1309 = vpack.c.b16 %v1072, %v993
    %v1310 = vpack.c.b16 %v1073, %v994
    %v1311 = vpack.c.b16 %v1074, %v995
    %v1312 = vpack.c.b16 %v1075, %v996
    %v1313 = vpack.c.b16 %v1076, %v997
    %v1314 = vpack.c.b16 %v1077, %v998
    %v1315 = vpack.c.b16 %v1078, %v999
    %v1316 = vpack.c.b16 %v1079, %v1000
    %v1317 = vpack.c.b16 %v1080, %v1001
    %v1318 = vpack.c.b16 %v1081, %v1002
    %v1319 = vpack.c.b16 %v1082, %v1003
    %v1320 = vpack.c.b16 %v1083, %v1004
    %v1321 = vpack.c.b16 %v1084, %v1005
    %v1322 = vpack.c.b16 %v1085, %v1006
    %v1323 = vpack.c.b16 %v1086, %v1007
    %v1324 = vpack.c.b16 %v1087, %v1008
    %v1325 = vpack.c.b16 %v1088, %v1009
    %v1326 = vpack.c.b16 %v1089, %v1010
    %v1327 = vpack.c.b16 %v1090, %v1011
    %v1328 = vpack.c.b16 %v1170, %v1091
    %v1329 = vpack.c.b16 %v1171, %v1092
    %v1330 = vpack.c.b16 %v1172, %v1093
    %v1331 = vpack.c.b16 %v1173, %v1094
    %v1332 = vpack.c.b16 %v1174, %v1095
    %v1333 = vpack.c.b16 %v1175, %v1096
    %v1334 = vpack.c.b16 %v1176, %v1097
    %v1335 = vpack.c.b16 %v1177, %v1098
    %v1336 = vpack.c.b16 %v1178, %v1099
    %v1337 = vpack.c.b16 %v1179, %v1100
    %v1338 = vpack.c.b16 %v1180, %v1101
    %v1339 = vpack.c.b16 %v1181, %v1102
    %v1340 = vpack.c.b16 %v1182, %v1103
    %v1341 = vpack.c.b16 %v1183, %v1104
    %v1342 = vpack.c.b16 %v1184, %v1105
    %v1343 = vpack.c.b16 %v1185, %v1106
    %v1344 = vpack.c.b16 %v1186, %v1107
    %v1345 = vpack.c.b16 %v1187, %v1108
    %v1346 = vpack.c.b16 %v1188, %v1109
    %v1347 = vpack.c.b16 %v1189, %v1110
    %v1348 = vpack.c.b16 %v1190, %v1111
    %v1349 = vpack.c.b16 %v1191, %v1112
    %v1350 = vpack.c.b16 %v1192, %v1113
    %v1351 = vpack.c.b16 %v1193, %v1114
    %v1352 = vpack.c.b16 %v1194, %v1115
    %v1353 = vpack.c.b16 %v1195, %v1116
    %v1354 = vpack.c.b16 %v1196, %v1117
    %v1355 = vpack.c.b16 %v1197, %v1118
    %v1356 = vpack.c.b16 %v1198, %v1119
    %v1357 = vpack.c.b16 %v1199, %v1120
    %v1358 = vpack.c.b16 %v1200, %v1121
    %v1359 = vpack.c.b16 %v1201, %v1122
    %v1360 = vpack.c.b16 %v1202, %v1123
    %v1361 = vpack.c.b16 %v1203, %v1124
    %v1362 = vpack.c.b16 %v1204, %v1125
    %v1363 = vpack.c.b16 %v1205, %v1126
    %v1364 = vpack.c.b16 %v1206, %v1127
    %v1365 = vpack.c.b16 %v1207, %v1128
    %v1366 = vpack.c.b16 %v1208, %v1129
    %v1367 = vpack.c.b16 %v1209, %v1130
    %v1368 = vpack.c.b16 %v1210, %v1131
    %v1369 = vpack.c.b16 %v1211, %v1132
    %v1370 = vpack.c.b16 %v1212, %v1133
    %v1371 = vpack.c.b16 %v1213, %v1134
    %v1372 = vpack.c.b16 %v1214, %v1135
    %v1373 = vpack.c.b16 %v1215, %v1136
    %v1374 = vpack.c.b16 %v1216, %v1137
    %v1375 = vpack.c.b16 %v1217, %v1138
    %v1376 = vpack.c.b16 %v1218, %v1139
    %v1377 = vpack.c.b16 %v1219, %v1140
    %v1378 = vpack.c.b16 %v1220, %v1141
    %v1379 = vpack.c.b16 %v1221, %v1142
    %v1380 = vpack.c.b16 %v1222, %v1143
    %v1381 = vpack.c.b16 %v1223, %v1144
    %v1382 = vpack.c.b16 %v1224, %v1145
    %v1383 = vpack.c.b16 %v1225, %v1146
    %v1384 = vpack.c.b16 %v1226, %v1147
    %v1385 = vpack.c.b16 %v1227, %v1148
    %v1386 = vpack.c.b16 %v1228, %v1149
    %v1387 = vpack.c.b16 %v1229, %v1150
    %v1388 = vpack.c.b16 %v1230, %v1151
    %v1389 = vpack.c.b16 %v1231, %v1152
    %v1390 = vpack.c.b16 %v1232, %v1153
    %v1391 = vpack.c.b16 %v1233, %v1154
    %v1392 = vpack.c.b16 %v1234, %v1155
    %v1393 = vpack.c.b16 %v1235, %v1156
    %v1394 = vpack.c.b16 %v1236, %v1157
    %v1395 = vpack.c.b16 %v1237, %v1158
    %v1396 = vpack.c.b16 %v1238, %v1159
    %v1397 = vpack.c.b16 %v1239, %v1160
    %v1398 = vpack.c.b16 %v1240, %v1161
    %v1399 = vpack.c.b16 %v1241, %v1162
    %v1400 = vpack.c.b16 %v1242, %v1163
    %v1401 = vpack.c.b16 %v1243, %v1164
    %v1402 = vpack.c.b16 %v1244, %v1165
    %v1403 = vpack.c.b16 %v1245, %v1166
    %v1404 = vpack.c.b16 %v1246, %v1167
    %v1405 = vpack.c.b16 %v1247, %v1168
    %v1406 = vpack.c.b16 %v1248, %v1169
    %v1566 = vsel %vm506, %v612, 0
    %1568 = vmatpush.bf16.msra.mxu0 0
    %1569 = vmatpush.bf16.msra.mxu0 0
    %1570 = vmatpush.bf16.msra.mxu0 0
    %1571 = vmatpush.bf16.msra.mxu0 0
    %1572 = vmatpush.bf16.msra.mxu0 0
    %1573 = vmatpush.bf16.msra.mxu0 0
    %1574 = vmatpush.bf16.msra.mxu0 %v1328
    %1575 = vmatpush.bf16.msra.mxu0 %v1249
    %1576 = vmatmul.bf16.gmra.mxu0 %v1566
    %v1577 = vpop.f32.mrf.mxu0
    %v1578 = vadd.f32 0.0, %v1577
    %v1579 = vpop.f32.mrf.mxu0
    %1580 = vdwg.mxu0
    %1581 = vmatpush.bf16.msra.mxu0 0
    %1582 = vmatpush.bf16.msra.mxu0 0
    %1583 = vmatpush.bf16.msra.mxu0 0
    %1584 = vmatpush.bf16.msra.mxu0 0
    %1585 = vmatpush.bf16.msra.mxu0 0
    %1586 = vmatpush.bf16.msra.mxu0 0
    %1587 = vmatpush.bf16.msra.mxu0 %v1329
    %1588 = vmatpush.bf16.msra.mxu0 %v1250
    %1589 = vmatmul.bf16.gmra.mxu0 %v1566
    %v1590 = vpop.f32.mrf.mxu0
    %v1591 = vadd.f32 0.0, %v1590
    %v1592 = vpop.f32.mrf.mxu0
    %1593 = vdwg.mxu0
    %1594 = vmatpush.bf16.msra.mxu0 0
    %1595 = vmatpush.bf16.msra.mxu0 0
    %1596 = vmatpush.bf16.msra.mxu0 0
    %1597 = vmatpush.bf16.msra.mxu0 0
    %1598 = vmatpush.bf16.msra.mxu0 0
    %1599 = vmatpush.bf16.msra.mxu0 0
    %1600 = vmatpush.bf16.msra.mxu0 %v1330
    %1601 = vmatpush.bf16.msra.mxu0 %v1251
    %1602 = vmatmul.bf16.gmra.mxu0 %v1566
    %v1603 = vpop.f32.mrf.mxu0
    %v1604 = vadd.f32 0.0, %v1603
    %v1605 = vpop.f32.mrf.mxu0
    %1606 = vdwg.mxu0
    %1607 = vmatpush.bf16.msra.mxu0 0
    %1608 = vmatpush.bf16.msra.mxu0 0
    %1609 = vmatpush.bf16.msra.mxu0 0
    %1610 = vmatpush.bf16.msra.mxu0 0
    %1611 = vmatpush.bf16.msra.mxu0 0
    %1612 = vmatpush.bf16.msra.mxu0 0
    %1613 = vmatpush.bf16.msra.mxu0 %v1331
    %1614 = vmatpush.bf16.msra.mxu0 %v1252
    %1615 = vmatmul.bf16.gmra.mxu0 %v1566
    %v1616 = vpop.f32.mrf.mxu0
    %v1617 = vadd.f32 0.0, %v1616
    %v1618 = vpop.f32.mrf.mxu0
    %1619 = vdwg.mxu0
    %1620 = vmatpush.bf16.msra.mxu0 0
    %1621 = vmatpush.bf16.msra.mxu0 0
    %1622 = vmatpush.bf16.msra.mxu0 0
    %1623 = vmatpush.bf16.msra.mxu0 0
    %1624 = vmatpush.bf16.msra.mxu0 0
    %1625 = vmatpush.bf16.msra.mxu0 0
    %1626 = vmatpush.bf16.msra.mxu0 %v1332
    %1627 = vmatpush.bf16.msra.mxu0 %v1253
    %1628 = vmatmul.bf16.gmra.mxu0 %v1566
    %v1629 = vpop.f32.mrf.mxu0
    %v1630 = vadd.f32 0.0, %v1629
    %v1631 = vpop.f32.mrf.mxu0
    %1632 = vdwg.mxu0
    %1633 = vmatpush.bf16.msra.mxu0 0
    %1634 = vmatpush.bf16.msra.mxu0 0
    %1635 = vmatpush.bf16.msra.mxu0 0
    %1636 = vmatpush.bf16.msra.mxu0 0
    %1637 = vmatpush.bf16.msra.mxu0 0
    %1638 = vmatpush.bf16.msra.mxu0 0
    %1639 = vmatpush.bf16.msra.mxu0 %v1333
    %1640 = vmatpush.bf16.msra.mxu0 %v1254
    %1641 = vmatmul.bf16.gmra.mxu0 %v1566
    %v1642 = vpop.f32.mrf.mxu0
    %v1643 = vadd.f32 0.0, %v1642
    %v1644 = vpop.f32.mrf.mxu0
    %1645 = vdwg.mxu0
    %1646 = vmatpush.bf16.msra.mxu0 0
    %1647 = vmatpush.bf16.msra.mxu0 0
    %1648 = vmatpush.bf16.msra.mxu0 0
    %1649 = vmatpush.bf16.msra.mxu0 0
    %1650 = vmatpush.bf16.msra.mxu0 0
    %1651 = vmatpush.bf16.msra.mxu0 0
    %1652 = vmatpush.bf16.msra.mxu0 %v1334
    %1653 = vmatpush.bf16.msra.mxu0 %v1255
    %1654 = vmatmul.bf16.gmra.mxu0 %v1566
    %v1655 = vpop.f32.mrf.mxu0
    %v1656 = vadd.f32 0.0, %v1655
    %v1657 = vpop.f32.mrf.mxu0
    %1658 = vdwg.mxu0
    %1659 = vmatpush.bf16.msra.mxu0 0
    %1660 = vmatpush.bf16.msra.mxu0 0
    %1661 = vmatpush.bf16.msra.mxu0 0
    %1662 = vmatpush.bf16.msra.mxu0 0
    %1663 = vmatpush.bf16.msra.mxu0 0
    %1664 = vmatpush.bf16.msra.mxu0 0
    %1665 = vmatpush.bf16.msra.mxu0 %v1335
    %1666 = vmatpush.bf16.msra.mxu0 %v1256
    %1667 = vmatmul.bf16.gmra.mxu0 %v1566
    %v1668 = vpop.f32.mrf.mxu0
    %v1669 = vadd.f32 0.0, %v1668
    %v1670 = vpop.f32.mrf.mxu0
    %1671 = vdwg.mxu0
    %1672 = vmatpush.bf16.msra.mxu0 0
    %1673 = vmatpush.bf16.msra.mxu0 0
    %1674 = vmatpush.bf16.msra.mxu0 0
    %1675 = vmatpush.bf16.msra.mxu0 0
    %1676 = vmatpush.bf16.msra.mxu0 0
    %1677 = vmatpush.bf16.msra.mxu0 0
    %1678 = vmatpush.bf16.msra.mxu0 %v1336
    %1679 = vmatpush.bf16.msra.mxu0 %v1257
    %1680 = vmatmul.bf16.gmra.mxu0 %v1566
    %v1681 = vpop.f32.mrf.mxu0
    %v1682 = vadd.f32 0.0, %v1681
    %v1683 = vpop.f32.mrf.mxu0
    %1684 = vdwg.mxu0
    %1685 = vmatpush.bf16.msra.mxu0 0
    %1686 = vmatpush.bf16.msra.mxu0 0
    %1687 = vmatpush.bf16.msra.mxu0 0
    %1688 = vmatpush.bf16.msra.mxu0 0
    %1689 = vmatpush.bf16.msra.mxu0 0
    %1690 = vmatpush.bf16.msra.mxu0 0
    %1691 = vmatpush.bf16.msra.mxu0 %v1337
    %1692 = vmatpush.bf16.msra.mxu0 %v1258
    %1693 = vmatmul.bf16.gmra.mxu0 %v1566
    %v1694 = vpop.f32.mrf.mxu0
    %v1695 = vadd.f32 0.0, %v1694
    %v1696 = vpop.f32.mrf.mxu0
    %1697 = vdwg.mxu0
    %1698 = vmatpush.bf16.msra.mxu0 0
    %1699 = vmatpush.bf16.msra.mxu0 0
    %1700 = vmatpush.bf16.msra.mxu0 0
    %1701 = vmatpush.bf16.msra.mxu0 0
    %1702 = vmatpush.bf16.msra.mxu0 0
    %1703 = vmatpush.bf16.msra.mxu0 0
    %1704 = vmatpush.bf16.msra.mxu0 %v1338
    %1705 = vmatpush.bf16.msra.mxu0 %v1259
    %1706 = vmatmul.bf16.gmra.mxu0 %v1566
    %v1707 = vpop.f32.mrf.mxu0
    %v1708 = vadd.f32 0.0, %v1707
    %v1709 = vpop.f32.mrf.mxu0
    %1710 = vdwg.mxu0
    %1711 = vmatpush.bf16.msra.mxu0 0
    %1712 = vmatpush.bf16.msra.mxu0 0
    %1713 = vmatpush.bf16.msra.mxu0 0
    %1714 = vmatpush.bf16.msra.mxu0 0
    %1715 = vmatpush.bf16.msra.mxu0 0
    %1716 = vmatpush.bf16.msra.mxu0 0
    %1717 = vmatpush.bf16.msra.mxu0 %v1339
    %1718 = vmatpush.bf16.msra.mxu0 %v1260
    %1719 = vmatmul.bf16.gmra.mxu0 %v1566
    %v1720 = vpop.f32.mrf.mxu0
    %v1721 = vadd.f32 0.0, %v1720
    %v1722 = vpop.f32.mrf.mxu0
    %1723 = vdwg.mxu0
    %1724 = vmatpush.bf16.msra.mxu0 0
    %1725 = vmatpush.bf16.msra.mxu0 0
    %1726 = vmatpush.bf16.msra.mxu0 0
    %1727 = vmatpush.bf16.msra.mxu0 0
    %1728 = vmatpush.bf16.msra.mxu0 0
    %1729 = vmatpush.bf16.msra.mxu0 0
    %1730 = vmatpush.bf16.msra.mxu0 %v1340
    %1731 = vmatpush.bf16.msra.mxu0 %v1261
    %1732 = vmatmul.bf16.gmra.mxu0 %v1566
    %v1733 = vpop.f32.mrf.mxu0
    %v1734 = vadd.f32 0.0, %v1733
    %v1735 = vpop.f32.mrf.mxu0
    %1736 = vdwg.mxu0
    %1737 = vmatpush.bf16.msra.mxu0 0
    %1738 = vmatpush.bf16.msra.mxu0 0
    %1739 = vmatpush.bf16.msra.mxu0 0
    %1740 = vmatpush.bf16.msra.mxu0 0
    %1741 = vmatpush.bf16.msra.mxu0 0
    %1742 = vmatpush.bf16.msra.mxu0 0
    %1743 = vmatpush.bf16.msra.mxu0 %v1341
    %1744 = vmatpush.bf16.msra.mxu0 %v1262
    %1745 = vmatmul.bf16.gmra.mxu0 %v1566
    %v1746 = vpop.f32.mrf.mxu0
    %v1747 = vadd.f32 0.0, %v1746
    %v1748 = vpop.f32.mrf.mxu0
    %1749 = vdwg.mxu0
    %1750 = vmatpush.bf16.msra.mxu0 0
    %1751 = vmatpush.bf16.msra.mxu0 0
    %1752 = vmatpush.bf16.msra.mxu0 0
    %1753 = vmatpush.bf16.msra.mxu0 0
    %1754 = vmatpush.bf16.msra.mxu0 0
    %1755 = vmatpush.bf16.msra.mxu0 0
    %1756 = vmatpush.bf16.msra.mxu0 %v1342
    %1757 = vmatpush.bf16.msra.mxu0 %v1263
    %1758 = vmatmul.bf16.gmra.mxu0 %v1566
    %v1759 = vpop.f32.mrf.mxu0
    %v1760 = vadd.f32 0.0, %v1759
    %v1761 = vpop.f32.mrf.mxu0
    %1762 = vdwg.mxu0
    %1763 = vmatpush.bf16.msra.mxu0 0
    %1764 = vmatpush.bf16.msra.mxu0 0
    %1765 = vmatpush.bf16.msra.mxu0 0
    %1766 = vmatpush.bf16.msra.mxu0 0
    %1767 = vmatpush.bf16.msra.mxu0 0
    %1768 = vmatpush.bf16.msra.mxu0 0
    %1769 = vmatpush.bf16.msra.mxu0 %v1343
    %1770 = vmatpush.bf16.msra.mxu0 %v1264
    %1771 = vmatmul.bf16.gmra.mxu0 %v1566
    %v1772 = vpop.f32.mrf.mxu0
    %v1773 = vadd.f32 0.0, %v1772
    %v1774 = vpop.f32.mrf.mxu0
    %1775 = vdwg.mxu0
    %1776 = vmatpush.bf16.msra.mxu0 0
    %1777 = vmatpush.bf16.msra.mxu0 0
    %1778 = vmatpush.bf16.msra.mxu0 0
    %1779 = vmatpush.bf16.msra.mxu0 0
    %1780 = vmatpush.bf16.msra.mxu0 0
    %1781 = vmatpush.bf16.msra.mxu0 0
    %1782 = vmatpush.bf16.msra.mxu0 %v1344
    %1783 = vmatpush.bf16.msra.mxu0 %v1265
    %1784 = vmatmul.bf16.gmra.mxu0 %v1566
    %v1785 = vpop.f32.mrf.mxu0
    %v1786 = vadd.f32 0.0, %v1785
    %v1787 = vpop.f32.mrf.mxu0
    %1788 = vdwg.mxu0
    %1789 = vmatpush.bf16.msra.mxu0 0
    %1790 = vmatpush.bf16.msra.mxu0 0
    %1791 = vmatpush.bf16.msra.mxu0 0
    %1792 = vmatpush.bf16.msra.mxu0 0
    %1793 = vmatpush.bf16.msra.mxu0 0
    %1794 = vmatpush.bf16.msra.mxu0 0
    %1795 = vmatpush.bf16.msra.mxu0 %v1345
    %1796 = vmatpush.bf16.msra.mxu0 %v1266
    %1797 = vmatmul.bf16.gmra.mxu0 %v1566
    %v1798 = vpop.f32.mrf.mxu0
    %v1799 = vadd.f32 0.0, %v1798
    %v1800 = vpop.f32.mrf.mxu0
    %1801 = vdwg.mxu0
    %1802 = vmatpush.bf16.msra.mxu0 0
    %1803 = vmatpush.bf16.msra.mxu0 0
    %1804 = vmatpush.bf16.msra.mxu0 0
    %1805 = vmatpush.bf16.msra.mxu0 0
    %1806 = vmatpush.bf16.msra.mxu0 0
    %1807 = vmatpush.bf16.msra.mxu0 0
    %1808 = vmatpush.bf16.msra.mxu0 %v1346
    %1809 = vmatpush.bf16.msra.mxu0 %v1267
    %1810 = vmatmul.bf16.gmra.mxu0 %v1566
    %v1811 = vpop.f32.mrf.mxu0
    %v1812 = vadd.f32 0.0, %v1811
    %v1813 = vpop.f32.mrf.mxu0
    %1814 = vdwg.mxu0
    %1815 = vmatpush.bf16.msra.mxu0 0
    %1816 = vmatpush.bf16.msra.mxu0 0
    %1817 = vmatpush.bf16.msra.mxu0 0
    %1818 = vmatpush.bf16.msra.mxu0 0
    %1819 = vmatpush.bf16.msra.mxu0 0
    %1820 = vmatpush.bf16.msra.mxu0 0
    %1821 = vmatpush.bf16.msra.mxu0 %v1347
    %1822 = vmatpush.bf16.msra.mxu0 %v1268
    %1823 = vmatmul.bf16.gmra.mxu0 %v1566
    %v1824 = vpop.f32.mrf.mxu0
    %v1825 = vadd.f32 0.0, %v1824
    %v1826 = vpop.f32.mrf.mxu0
    %1827 = vdwg.mxu0
    %1828 = vmatpush.bf16.msra.mxu0 0
    %1829 = vmatpush.bf16.msra.mxu0 0
    %1830 = vmatpush.bf16.msra.mxu0 0
    %1831 = vmatpush.bf16.msra.mxu0 0
    %1832 = vmatpush.bf16.msra.mxu0 0
    %1833 = vmatpush.bf16.msra.mxu0 0
    %1834 = vmatpush.bf16.msra.mxu0 %v1348
    %1835 = vmatpush.bf16.msra.mxu0 %v1269
    %1836 = vmatmul.bf16.gmra.mxu0 %v1566
    %v1837 = vpop.f32.mrf.mxu0
    %v1838 = vadd.f32 0.0, %v1837
    %v1839 = vpop.f32.mrf.mxu0
    %1840 = vdwg.mxu0
    %1841 = vmatpush.bf16.msra.mxu0 0
    %1842 = vmatpush.bf16.msra.mxu0 0
    %1843 = vmatpush.bf16.msra.mxu0 0
    %1844 = vmatpush.bf16.msra.mxu0 0
    %1845 = vmatpush.bf16.msra.mxu0 0
    %1846 = vmatpush.bf16.msra.mxu0 0
    %1847 = vmatpush.bf16.msra.mxu0 %v1349
    %1848 = vmatpush.bf16.msra.mxu0 %v1270
    %1849 = vmatmul.bf16.gmra.mxu0 %v1566
    %v1850 = vpop.f32.mrf.mxu0
    %v1851 = vadd.f32 0.0, %v1850
    %v1852 = vpop.f32.mrf.mxu0
    %1853 = vdwg.mxu0
    %1854 = vmatpush.bf16.msra.mxu0 0
    %1855 = vmatpush.bf16.msra.mxu0 0
    %1856 = vmatpush.bf16.msra.mxu0 0
    %1857 = vmatpush.bf16.msra.mxu0 0
    %1858 = vmatpush.bf16.msra.mxu0 0
    %1859 = vmatpush.bf16.msra.mxu0 0
    %1860 = vmatpush.bf16.msra.mxu0 %v1350
    %1861 = vmatpush.bf16.msra.mxu0 %v1271
    %1862 = vmatmul.bf16.gmra.mxu0 %v1566
    %v1863 = vpop.f32.mrf.mxu0
    %v1864 = vadd.f32 0.0, %v1863
    %v1865 = vpop.f32.mrf.mxu0
    %1866 = vdwg.mxu0
    %1867 = vmatpush.bf16.msra.mxu0 0
    %1868 = vmatpush.bf16.msra.mxu0 0
    %1869 = vmatpush.bf16.msra.mxu0 0
    %1870 = vmatpush.bf16.msra.mxu0 0
    %1871 = vmatpush.bf16.msra.mxu0 0
    %1872 = vmatpush.bf16.msra.mxu0 0
    %1873 = vmatpush.bf16.msra.mxu0 %v1351
    %1874 = vmatpush.bf16.msra.mxu0 %v1272
    %1875 = vmatmul.bf16.gmra.mxu0 %v1566
    %v1876 = vpop.f32.mrf.mxu0
    %v1877 = vadd.f32 0.0, %v1876
    %v1878 = vpop.f32.mrf.mxu0
    %1879 = vdwg.mxu0
    %1880 = vmatpush.bf16.msra.mxu0 0
    %1881 = vmatpush.bf16.msra.mxu0 0
    %1882 = vmatpush.bf16.msra.mxu0 0
    %1883 = vmatpush.bf16.msra.mxu0 0
    %1884 = vmatpush.bf16.msra.mxu0 0
    %1885 = vmatpush.bf16.msra.mxu0 0
    %1886 = vmatpush.bf16.msra.mxu0 %v1352
    %1887 = vmatpush.bf16.msra.mxu0 %v1273
    %1888 = vmatmul.bf16.gmra.mxu0 %v1566
    %v1889 = vpop.f32.mrf.mxu0
    %v1890 = vadd.f32 0.0, %v1889
    %v1891 = vpop.f32.mrf.mxu0
    %1892 = vdwg.mxu0
    %1893 = vmatpush.bf16.msra.mxu0 0
    %1894 = vmatpush.bf16.msra.mxu0 0
    %1895 = vmatpush.bf16.msra.mxu0 0
    %1896 = vmatpush.bf16.msra.mxu0 0
    %1897 = vmatpush.bf16.msra.mxu0 0
    %1898 = vmatpush.bf16.msra.mxu0 0
    %1899 = vmatpush.bf16.msra.mxu0 %v1353
    %1900 = vmatpush.bf16.msra.mxu0 %v1274
    %1901 = vmatmul.bf16.gmra.mxu0 %v1566
    %v1902 = vpop.f32.mrf.mxu0
    %v1903 = vadd.f32 0.0, %v1902
    %v1904 = vpop.f32.mrf.mxu0
    %1905 = vdwg.mxu0
    %1906 = vmatpush.bf16.msra.mxu0 0
    %1907 = vmatpush.bf16.msra.mxu0 0
    %1908 = vmatpush.bf16.msra.mxu0 0
    %1909 = vmatpush.bf16.msra.mxu0 0
    %1910 = vmatpush.bf16.msra.mxu0 0
    %1911 = vmatpush.bf16.msra.mxu0 0
    %1912 = vmatpush.bf16.msra.mxu0 %v1354
    %1913 = vmatpush.bf16.msra.mxu0 %v1275
    %1914 = vmatmul.bf16.gmra.mxu0 %v1566
    %v1915 = vpop.f32.mrf.mxu0
    %v1916 = vadd.f32 0.0, %v1915
    %v1917 = vpop.f32.mrf.mxu0
    %1918 = vdwg.mxu0
    %1919 = vmatpush.bf16.msra.mxu0 0
    %1920 = vmatpush.bf16.msra.mxu0 0
    %1921 = vmatpush.bf16.msra.mxu0 0
    %1922 = vmatpush.bf16.msra.mxu0 0
    %1923 = vmatpush.bf16.msra.mxu0 0
    %1924 = vmatpush.bf16.msra.mxu0 0
    %1925 = vmatpush.bf16.msra.mxu0 %v1355
    %1926 = vmatpush.bf16.msra.mxu0 %v1276
    %1927 = vmatmul.bf16.gmra.mxu0 %v1566
    %v1928 = vpop.f32.mrf.mxu0
    %v1929 = vadd.f32 0.0, %v1928
    %v1930 = vpop.f32.mrf.mxu0
    %1931 = vdwg.mxu0
    %1932 = vmatpush.bf16.msra.mxu0 0
    %1933 = vmatpush.bf16.msra.mxu0 0
    %1934 = vmatpush.bf16.msra.mxu0 0
    %1935 = vmatpush.bf16.msra.mxu0 0
    %1936 = vmatpush.bf16.msra.mxu0 0
    %1937 = vmatpush.bf16.msra.mxu0 0
    %1938 = vmatpush.bf16.msra.mxu0 %v1356
    %1939 = vmatpush.bf16.msra.mxu0 %v1277
    %1940 = vmatmul.bf16.gmra.mxu0 %v1566
    %v1941 = vpop.f32.mrf.mxu0
    %v1942 = vadd.f32 0.0, %v1941
    %v1943 = vpop.f32.mrf.mxu0
    %1944 = vdwg.mxu0
    %1945 = vmatpush.bf16.msra.mxu0 0
    %1946 = vmatpush.bf16.msra.mxu0 0
    %1947 = vmatpush.bf16.msra.mxu0 0
    %1948 = vmatpush.bf16.msra.mxu0 0
    %1949 = vmatpush.bf16.msra.mxu0 0
    %1950 = vmatpush.bf16.msra.mxu0 0
    %1951 = vmatpush.bf16.msra.mxu0 %v1357
    %1952 = vmatpush.bf16.msra.mxu0 %v1278
    %1953 = vmatmul.bf16.gmra.mxu0 %v1566
    %v1954 = vpop.f32.mrf.mxu0
    %v1955 = vadd.f32 0.0, %v1954
    %v1956 = vpop.f32.mrf.mxu0
    %1957 = vdwg.mxu0
    %1958 = vmatpush.bf16.msra.mxu0 0
    %1959 = vmatpush.bf16.msra.mxu0 0
    %1960 = vmatpush.bf16.msra.mxu0 0
    %1961 = vmatpush.bf16.msra.mxu0 0
    %1962 = vmatpush.bf16.msra.mxu0 0
    %1963 = vmatpush.bf16.msra.mxu0 0
    %1964 = vmatpush.bf16.msra.mxu0 %v1358
    %1965 = vmatpush.bf16.msra.mxu0 %v1279
    %1966 = vmatmul.bf16.gmra.mxu0 %v1566
    %v1967 = vpop.f32.mrf.mxu0
    %v1968 = vadd.f32 0.0, %v1967
    %v1969 = vpop.f32.mrf.mxu0
    %1970 = vdwg.mxu0
    %1971 = vmatpush.bf16.msra.mxu0 0
    %1972 = vmatpush.bf16.msra.mxu0 0
    %1973 = vmatpush.bf16.msra.mxu0 0
    %1974 = vmatpush.bf16.msra.mxu0 0
    %1975 = vmatpush.bf16.msra.mxu0 0
    %1976 = vmatpush.bf16.msra.mxu0 0
    %1977 = vmatpush.bf16.msra.mxu0 %v1359
    %1978 = vmatpush.bf16.msra.mxu0 %v1280
    %1979 = vmatmul.bf16.gmra.mxu0 %v1566
    %v1980 = vpop.f32.mrf.mxu0
    %v1981 = vadd.f32 0.0, %v1980
    %v1982 = vpop.f32.mrf.mxu0
    %1983 = vdwg.mxu0
    %1984 = vmatpush.bf16.msra.mxu0 0
    %1985 = vmatpush.bf16.msra.mxu0 0
    %1986 = vmatpush.bf16.msra.mxu0 0
    %1987 = vmatpush.bf16.msra.mxu0 0
    %1988 = vmatpush.bf16.msra.mxu0 0
    %1989 = vmatpush.bf16.msra.mxu0 0
    %1990 = vmatpush.bf16.msra.mxu0 %v1360
    %1991 = vmatpush.bf16.msra.mxu0 %v1281
    %1992 = vmatmul.bf16.gmra.mxu0 %v1566
    %v1993 = vpop.f32.mrf.mxu0
    %v1994 = vadd.f32 0.0, %v1993
    %v1995 = vpop.f32.mrf.mxu0
    %1996 = vdwg.mxu0
    %1997 = vmatpush.bf16.msra.mxu0 0
    %1998 = vmatpush.bf16.msra.mxu0 0
    %1999 = vmatpush.bf16.msra.mxu0 0
    %2000 = vmatpush.bf16.msra.mxu0 0
    %2001 = vmatpush.bf16.msra.mxu0 0
    %2002 = vmatpush.bf16.msra.mxu0 0
    %2003 = vmatpush.bf16.msra.mxu0 %v1361
    %2004 = vmatpush.bf16.msra.mxu0 %v1282
    %2005 = vmatmul.bf16.gmra.mxu0 %v1566
    %v2006 = vpop.f32.mrf.mxu0
    %v2007 = vadd.f32 0.0, %v2006
    %v2008 = vpop.f32.mrf.mxu0
    %2009 = vdwg.mxu0
    %2010 = vmatpush.bf16.msra.mxu0 0
    %2011 = vmatpush.bf16.msra.mxu0 0
    %2012 = vmatpush.bf16.msra.mxu0 0
    %2013 = vmatpush.bf16.msra.mxu0 0
    %2014 = vmatpush.bf16.msra.mxu0 0
    %2015 = vmatpush.bf16.msra.mxu0 0
    %2016 = vmatpush.bf16.msra.mxu0 %v1362
    %2017 = vmatpush.bf16.msra.mxu0 %v1283
    %2018 = vmatmul.bf16.gmra.mxu0 %v1566
    %v2019 = vpop.f32.mrf.mxu0
    %v2020 = vadd.f32 0.0, %v2019
    %v2021 = vpop.f32.mrf.mxu0
    %2022 = vdwg.mxu0
    %2023 = vmatpush.bf16.msra.mxu0 0
    %2024 = vmatpush.bf16.msra.mxu0 0
    %2025 = vmatpush.bf16.msra.mxu0 0
    %2026 = vmatpush.bf16.msra.mxu0 0
    %2027 = vmatpush.bf16.msra.mxu0 0
    %2028 = vmatpush.bf16.msra.mxu0 0
    %2029 = vmatpush.bf16.msra.mxu0 %v1363
    %2030 = vmatpush.bf16.msra.mxu0 %v1284
    %2031 = vmatmul.bf16.gmra.mxu0 %v1566
    %v2032 = vpop.f32.mrf.mxu0
    %v2033 = vadd.f32 0.0, %v2032
    %v2034 = vpop.f32.mrf.mxu0
    %2035 = vdwg.mxu0
    %2036 = vmatpush.bf16.msra.mxu0 0
    %2037 = vmatpush.bf16.msra.mxu0 0
    %2038 = vmatpush.bf16.msra.mxu0 0
    %2039 = vmatpush.bf16.msra.mxu0 0
    %2040 = vmatpush.bf16.msra.mxu0 0
    %2041 = vmatpush.bf16.msra.mxu0 0
    %2042 = vmatpush.bf16.msra.mxu0 %v1364
    %2043 = vmatpush.bf16.msra.mxu0 %v1285
    %2044 = vmatmul.bf16.gmra.mxu0 %v1566
    %v2045 = vpop.f32.mrf.mxu0
    %v2046 = vadd.f32 0.0, %v2045
    %v2047 = vpop.f32.mrf.mxu0
    %2048 = vdwg.mxu0
    %2049 = vmatpush.bf16.msra.mxu0 0
    %2050 = vmatpush.bf16.msra.mxu0 0
    %2051 = vmatpush.bf16.msra.mxu0 0
    %2052 = vmatpush.bf16.msra.mxu0 0
    %2053 = vmatpush.bf16.msra.mxu0 0
    %2054 = vmatpush.bf16.msra.mxu0 0
    %2055 = vmatpush.bf16.msra.mxu0 %v1365
    %2056 = vmatpush.bf16.msra.mxu0 %v1286
    %2057 = vmatmul.bf16.gmra.mxu0 %v1566
    %v2058 = vpop.f32.mrf.mxu0
    %v2059 = vadd.f32 0.0, %v2058
    %v2060 = vpop.f32.mrf.mxu0
    %2061 = vdwg.mxu0
    %2062 = vmatpush.bf16.msra.mxu0 0
    %2063 = vmatpush.bf16.msra.mxu0 0
    %2064 = vmatpush.bf16.msra.mxu0 0
    %2065 = vmatpush.bf16.msra.mxu0 0
    %2066 = vmatpush.bf16.msra.mxu0 0
    %2067 = vmatpush.bf16.msra.mxu0 0
    %2068 = vmatpush.bf16.msra.mxu0 %v1366
    %2069 = vmatpush.bf16.msra.mxu0 %v1287
    %2070 = vmatmul.bf16.gmra.mxu0 %v1566
    %v2071 = vpop.f32.mrf.mxu0
    %v2072 = vadd.f32 0.0, %v2071
    %v2073 = vpop.f32.mrf.mxu0
    %2074 = vdwg.mxu0
    %2075 = vmatpush.bf16.msra.mxu0 0
    %2076 = vmatpush.bf16.msra.mxu0 0
    %2077 = vmatpush.bf16.msra.mxu0 0
    %2078 = vmatpush.bf16.msra.mxu0 0
    %2079 = vmatpush.bf16.msra.mxu0 0
    %2080 = vmatpush.bf16.msra.mxu0 0
    %2081 = vmatpush.bf16.msra.mxu0 %v1367
    %2082 = vmatpush.bf16.msra.mxu0 %v1288
    %2083 = vmatmul.bf16.gmra.mxu0 %v1566
    %v2084 = vpop.f32.mrf.mxu0
    %v2085 = vadd.f32 0.0, %v2084
    %v2086 = vpop.f32.mrf.mxu0
    %2087 = vdwg.mxu0
    %2088 = vmatpush.bf16.msra.mxu0 0
    %2089 = vmatpush.bf16.msra.mxu0 0
    %2090 = vmatpush.bf16.msra.mxu0 0
    %2091 = vmatpush.bf16.msra.mxu0 0
    %2092 = vmatpush.bf16.msra.mxu0 0
    %2093 = vmatpush.bf16.msra.mxu0 0
    %2094 = vmatpush.bf16.msra.mxu0 %v1368
    %2095 = vmatpush.bf16.msra.mxu0 %v1289
    %2096 = vmatmul.bf16.gmra.mxu0 %v1566
    %v2097 = vpop.f32.mrf.mxu0
    %v2098 = vadd.f32 0.0, %v2097
    %v2099 = vpop.f32.mrf.mxu0
    %2100 = vdwg.mxu0
    %2101 = vmatpush.bf16.msra.mxu0 0
    %2102 = vmatpush.bf16.msra.mxu0 0
    %2103 = vmatpush.bf16.msra.mxu0 0
    %2104 = vmatpush.bf16.msra.mxu0 0
    %2105 = vmatpush.bf16.msra.mxu0 0
    %2106 = vmatpush.bf16.msra.mxu0 0
    %2107 = vmatpush.bf16.msra.mxu0 %v1369
    %2108 = vmatpush.bf16.msra.mxu0 %v1290
    %2109 = vmatmul.bf16.gmra.mxu0 %v1566
    %v2110 = vpop.f32.mrf.mxu0
    %v2111 = vadd.f32 0.0, %v2110
    %v2112 = vpop.f32.mrf.mxu0
    %2113 = vdwg.mxu0
    %2114 = vmatpush.bf16.msra.mxu0 0
    %2115 = vmatpush.bf16.msra.mxu0 0
    %2116 = vmatpush.bf16.msra.mxu0 0
    %2117 = vmatpush.bf16.msra.mxu0 0
    %2118 = vmatpush.bf16.msra.mxu0 0
    %2119 = vmatpush.bf16.msra.mxu0 0
    %2120 = vmatpush.bf16.msra.mxu0 %v1370
    %2121 = vmatpush.bf16.msra.mxu0 %v1291
    %2122 = vmatmul.bf16.gmra.mxu0 %v1566
    %v2123 = vpop.f32.mrf.mxu0
    %v2124 = vadd.f32 0.0, %v2123
    %v2125 = vpop.f32.mrf.mxu0
    %2126 = vdwg.mxu0
    %2127 = vmatpush.bf16.msra.mxu0 0
    %2128 = vmatpush.bf16.msra.mxu0 0
    %2129 = vmatpush.bf16.msra.mxu0 0
    %2130 = vmatpush.bf16.msra.mxu0 0
    %2131 = vmatpush.bf16.msra.mxu0 0
    %2132 = vmatpush.bf16.msra.mxu0 0
    %2133 = vmatpush.bf16.msra.mxu0 %v1371
    %2134 = vmatpush.bf16.msra.mxu0 %v1292
    %2135 = vmatmul.bf16.gmra.mxu0 %v1566
    %v2136 = vpop.f32.mrf.mxu0
    %v2137 = vadd.f32 0.0, %v2136
    %v2138 = vpop.f32.mrf.mxu0
    %2139 = vdwg.mxu0
    %2140 = vmatpush.bf16.msra.mxu0 0
    %2141 = vmatpush.bf16.msra.mxu0 0
    %2142 = vmatpush.bf16.msra.mxu0 0
    %2143 = vmatpush.bf16.msra.mxu0 0
    %2144 = vmatpush.bf16.msra.mxu0 0
    %2145 = vmatpush.bf16.msra.mxu0 0
    %2146 = vmatpush.bf16.msra.mxu0 %v1372
    %2147 = vmatpush.bf16.msra.mxu0 %v1293
    %2148 = vmatmul.bf16.gmra.mxu0 %v1566
    %v2149 = vpop.f32.mrf.mxu0
    %v2150 = vadd.f32 0.0, %v2149
    %v2151 = vpop.f32.mrf.mxu0
    %2152 = vdwg.mxu0
    %2153 = vmatpush.bf16.msra.mxu0 0
    %2154 = vmatpush.bf16.msra.mxu0 0
    %2155 = vmatpush.bf16.msra.mxu0 0
    %2156 = vmatpush.bf16.msra.mxu0 0
    %2157 = vmatpush.bf16.msra.mxu0 0
    %2158 = vmatpush.bf16.msra.mxu0 0
    %2159 = vmatpush.bf16.msra.mxu0 %v1373
    %2160 = vmatpush.bf16.msra.mxu0 %v1294
    %2161 = vmatmul.bf16.gmra.mxu0 %v1566
    %v2162 = vpop.f32.mrf.mxu0
    %v2163 = vadd.f32 0.0, %v2162
    %v2164 = vpop.f32.mrf.mxu0
    %2165 = vdwg.mxu0
    %2166 = vmatpush.bf16.msra.mxu0 0
    %2167 = vmatpush.bf16.msra.mxu0 0
    %2168 = vmatpush.bf16.msra.mxu0 0
    %2169 = vmatpush.bf16.msra.mxu0 0
    %2170 = vmatpush.bf16.msra.mxu0 0
    %2171 = vmatpush.bf16.msra.mxu0 0
    %2172 = vmatpush.bf16.msra.mxu0 %v1374
    %2173 = vmatpush.bf16.msra.mxu0 %v1295
    %2174 = vmatmul.bf16.gmra.mxu0 %v1566
    %v2175 = vpop.f32.mrf.mxu0
    %v2176 = vadd.f32 0.0, %v2175
    %v2177 = vpop.f32.mrf.mxu0
    %2178 = vdwg.mxu0
    %2179 = vmatpush.bf16.msra.mxu0 0
    %2180 = vmatpush.bf16.msra.mxu0 0
    %2181 = vmatpush.bf16.msra.mxu0 0
    %2182 = vmatpush.bf16.msra.mxu0 0
    %2183 = vmatpush.bf16.msra.mxu0 0
    %2184 = vmatpush.bf16.msra.mxu0 0
    %2185 = vmatpush.bf16.msra.mxu0 %v1375
    %2186 = vmatpush.bf16.msra.mxu0 %v1296
    %2187 = vmatmul.bf16.gmra.mxu0 %v1566
    %v2188 = vpop.f32.mrf.mxu0
    %v2189 = vadd.f32 0.0, %v2188
    %v2190 = vpop.f32.mrf.mxu0
    %2191 = vdwg.mxu0
    %2192 = vmatpush.bf16.msra.mxu0 0
    %2193 = vmatpush.bf16.msra.mxu0 0
    %2194 = vmatpush.bf16.msra.mxu0 0
    %2195 = vmatpush.bf16.msra.mxu0 0
    %2196 = vmatpush.bf16.msra.mxu0 0
    %2197 = vmatpush.bf16.msra.mxu0 0
    %2198 = vmatpush.bf16.msra.mxu0 %v1376
    %2199 = vmatpush.bf16.msra.mxu0 %v1297
    %2200 = vmatmul.bf16.gmra.mxu0 %v1566
    %v2201 = vpop.f32.mrf.mxu0
    %v2202 = vadd.f32 0.0, %v2201
    %v2203 = vpop.f32.mrf.mxu0
    %2204 = vdwg.mxu0
    %2205 = vmatpush.bf16.msra.mxu0 0
    %2206 = vmatpush.bf16.msra.mxu0 0
    %2207 = vmatpush.bf16.msra.mxu0 0
    %2208 = vmatpush.bf16.msra.mxu0 0
    %2209 = vmatpush.bf16.msra.mxu0 0
    %2210 = vmatpush.bf16.msra.mxu0 0
    %2211 = vmatpush.bf16.msra.mxu0 %v1377
    %2212 = vmatpush.bf16.msra.mxu0 %v1298
    %2213 = vmatmul.bf16.gmra.mxu0 %v1566
    %v2214 = vpop.f32.mrf.mxu0
    %v2215 = vadd.f32 0.0, %v2214
    %v2216 = vpop.f32.mrf.mxu0
    %2217 = vdwg.mxu0
    %2218 = vmatpush.bf16.msra.mxu0 0
    %2219 = vmatpush.bf16.msra.mxu0 0
    %2220 = vmatpush.bf16.msra.mxu0 0
    %2221 = vmatpush.bf16.msra.mxu0 0
    %2222 = vmatpush.bf16.msra.mxu0 0
    %2223 = vmatpush.bf16.msra.mxu0 0
    %2224 = vmatpush.bf16.msra.mxu0 %v1378
    %2225 = vmatpush.bf16.msra.mxu0 %v1299
    %2226 = vmatmul.bf16.gmra.mxu0 %v1566
    %v2227 = vpop.f32.mrf.mxu0
    %v2228 = vadd.f32 0.0, %v2227
    %v2229 = vpop.f32.mrf.mxu0
    %2230 = vdwg.mxu0
    %2231 = vmatpush.bf16.msra.mxu0 0
    %2232 = vmatpush.bf16.msra.mxu0 0
    %2233 = vmatpush.bf16.msra.mxu0 0
    %2234 = vmatpush.bf16.msra.mxu0 0
    %2235 = vmatpush.bf16.msra.mxu0 0
    %2236 = vmatpush.bf16.msra.mxu0 0
    %2237 = vmatpush.bf16.msra.mxu0 %v1379
    %2238 = vmatpush.bf16.msra.mxu0 %v1300
    %2239 = vmatmul.bf16.gmra.mxu0 %v1566
    %v2240 = vpop.f32.mrf.mxu0
    %v2241 = vadd.f32 0.0, %v2240
    %v2242 = vpop.f32.mrf.mxu0
    %2243 = vdwg.mxu0
    %2244 = vmatpush.bf16.msra.mxu0 0
    %2245 = vmatpush.bf16.msra.mxu0 0
    %2246 = vmatpush.bf16.msra.mxu0 0
    %2247 = vmatpush.bf16.msra.mxu0 0
    %2248 = vmatpush.bf16.msra.mxu0 0
    %2249 = vmatpush.bf16.msra.mxu0 0
    %2250 = vmatpush.bf16.msra.mxu0 %v1380
    %2251 = vmatpush.bf16.msra.mxu0 %v1301
    %2252 = vmatmul.bf16.gmra.mxu0 %v1566
    %v2253 = vpop.f32.mrf.mxu0
    %v2254 = vadd.f32 0.0, %v2253
    %v2255 = vpop.f32.mrf.mxu0
    %2256 = vdwg.mxu0
    %2257 = vmatpush.bf16.msra.mxu0 0
    %2258 = vmatpush.bf16.msra.mxu0 0
    %2259 = vmatpush.bf16.msra.mxu0 0
    %2260 = vmatpush.bf16.msra.mxu0 0
    %2261 = vmatpush.bf16.msra.mxu0 0
    %2262 = vmatpush.bf16.msra.mxu0 0
    %2263 = vmatpush.bf16.msra.mxu0 %v1381
    %2264 = vmatpush.bf16.msra.mxu0 %v1302
    %2265 = vmatmul.bf16.gmra.mxu0 %v1566
    %v2266 = vpop.f32.mrf.mxu0
    %v2267 = vadd.f32 0.0, %v2266
    %v2268 = vpop.f32.mrf.mxu0
    %2269 = vdwg.mxu0
    %2270 = vmatpush.bf16.msra.mxu0 0
    %2271 = vmatpush.bf16.msra.mxu0 0
    %2272 = vmatpush.bf16.msra.mxu0 0
    %2273 = vmatpush.bf16.msra.mxu0 0
    %2274 = vmatpush.bf16.msra.mxu0 0
    %2275 = vmatpush.bf16.msra.mxu0 0
    %2276 = vmatpush.bf16.msra.mxu0 %v1382
    %2277 = vmatpush.bf16.msra.mxu0 %v1303
    %2278 = vmatmul.bf16.gmra.mxu0 %v1566
    %v2279 = vpop.f32.mrf.mxu0
    %v2280 = vadd.f32 0.0, %v2279
    %v2281 = vpop.f32.mrf.mxu0
    %2282 = vdwg.mxu0
    %2283 = vmatpush.bf16.msra.mxu0 0
    %2284 = vmatpush.bf16.msra.mxu0 0
    %2285 = vmatpush.bf16.msra.mxu0 0
    %2286 = vmatpush.bf16.msra.mxu0 0
    %2287 = vmatpush.bf16.msra.mxu0 0
    %2288 = vmatpush.bf16.msra.mxu0 0
    %2289 = vmatpush.bf16.msra.mxu0 %v1383
    %2290 = vmatpush.bf16.msra.mxu0 %v1304
    %2291 = vmatmul.bf16.gmra.mxu0 %v1566
    %v2292 = vpop.f32.mrf.mxu0
    %v2293 = vadd.f32 0.0, %v2292
    %v2294 = vpop.f32.mrf.mxu0
    %2295 = vdwg.mxu0
    %2296 = vmatpush.bf16.msra.mxu0 0
    %2297 = vmatpush.bf16.msra.mxu0 0
    %2298 = vmatpush.bf16.msra.mxu0 0
    %2299 = vmatpush.bf16.msra.mxu0 0
    %2300 = vmatpush.bf16.msra.mxu0 0
    %2301 = vmatpush.bf16.msra.mxu0 0
    %2302 = vmatpush.bf16.msra.mxu0 %v1384
    %2303 = vmatpush.bf16.msra.mxu0 %v1305
    %2304 = vmatmul.bf16.gmra.mxu0 %v1566
    %v2305 = vpop.f32.mrf.mxu0
    %v2306 = vadd.f32 0.0, %v2305
    %v2307 = vpop.f32.mrf.mxu0
    %2308 = vdwg.mxu0
    %2309 = vmatpush.bf16.msra.mxu0 0
    %2310 = vmatpush.bf16.msra.mxu0 0
    %2311 = vmatpush.bf16.msra.mxu0 0
    %2312 = vmatpush.bf16.msra.mxu0 0
    %2313 = vmatpush.bf16.msra.mxu0 0
    %2314 = vmatpush.bf16.msra.mxu0 0
    %2315 = vmatpush.bf16.msra.mxu0 %v1385
    %2316 = vmatpush.bf16.msra.mxu0 %v1306
    %2317 = vmatmul.bf16.gmra.mxu0 %v1566
    %v2318 = vpop.f32.mrf.mxu0
    %v2319 = vadd.f32 0.0, %v2318
    %v2320 = vpop.f32.mrf.mxu0
    %2321 = vdwg.mxu0
    %2322 = vmatpush.bf16.msra.mxu0 0
    %2323 = vmatpush.bf16.msra.mxu0 0
    %2324 = vmatpush.bf16.msra.mxu0 0
    %2325 = vmatpush.bf16.msra.mxu0 0
    %2326 = vmatpush.bf16.msra.mxu0 0
    %2327 = vmatpush.bf16.msra.mxu0 0
    %2328 = vmatpush.bf16.msra.mxu0 %v1386
    %2329 = vmatpush.bf16.msra.mxu0 %v1307
    %2330 = vmatmul.bf16.gmra.mxu0 %v1566
    %v2331 = vpop.f32.mrf.mxu0
    %v2332 = vadd.f32 0.0, %v2331
    %v2333 = vpop.f32.mrf.mxu0
    %2334 = vdwg.mxu0
    %2335 = vmatpush.bf16.msra.mxu0 0
    %2336 = vmatpush.bf16.msra.mxu0 0
    %2337 = vmatpush.bf16.msra.mxu0 0
    %2338 = vmatpush.bf16.msra.mxu0 0
    %2339 = vmatpush.bf16.msra.mxu0 0
    %2340 = vmatpush.bf16.msra.mxu0 0
    %2341 = vmatpush.bf16.msra.mxu0 %v1387
    %2342 = vmatpush.bf16.msra.mxu0 %v1308
    %2343 = vmatmul.bf16.gmra.mxu0 %v1566
    %v2344 = vpop.f32.mrf.mxu0
    %v2345 = vadd.f32 0.0, %v2344
    %v2346 = vpop.f32.mrf.mxu0
    %2347 = vdwg.mxu0
    %2348 = vmatpush.bf16.msra.mxu0 0
    %2349 = vmatpush.bf16.msra.mxu0 0
    %2350 = vmatpush.bf16.msra.mxu0 0
    %2351 = vmatpush.bf16.msra.mxu0 0
    %2352 = vmatpush.bf16.msra.mxu0 0
    %2353 = vmatpush.bf16.msra.mxu0 0
    %2354 = vmatpush.bf16.msra.mxu0 %v1388
    %2355 = vmatpush.bf16.msra.mxu0 %v1309
    %2356 = vmatmul.bf16.gmra.mxu0 %v1566
    %v2357 = vpop.f32.mrf.mxu0
    %v2358 = vadd.f32 0.0, %v2357
    %v2359 = vpop.f32.mrf.mxu0
    %2360 = vdwg.mxu0
    %2361 = vmatpush.bf16.msra.mxu0 0
    %2362 = vmatpush.bf16.msra.mxu0 0
    %2363 = vmatpush.bf16.msra.mxu0 0
    %2364 = vmatpush.bf16.msra.mxu0 0
    %2365 = vmatpush.bf16.msra.mxu0 0
    %2366 = vmatpush.bf16.msra.mxu0 0
    %2367 = vmatpush.bf16.msra.mxu0 %v1389
    %2368 = vmatpush.bf16.msra.mxu0 %v1310
    %2369 = vmatmul.bf16.gmra.mxu0 %v1566
    %v2370 = vpop.f32.mrf.mxu0
    %v2371 = vadd.f32 0.0, %v2370
    %v2372 = vpop.f32.mrf.mxu0
    %2373 = vdwg.mxu0
    %2374 = vmatpush.bf16.msra.mxu0 0
    %2375 = vmatpush.bf16.msra.mxu0 0
    %2376 = vmatpush.bf16.msra.mxu0 0
    %2377 = vmatpush.bf16.msra.mxu0 0
    %2378 = vmatpush.bf16.msra.mxu0 0
    %2379 = vmatpush.bf16.msra.mxu0 0
    %2380 = vmatpush.bf16.msra.mxu0 %v1390
    %2381 = vmatpush.bf16.msra.mxu0 %v1311
    %2382 = vmatmul.bf16.gmra.mxu0 %v1566
    %v2383 = vpop.f32.mrf.mxu0
    %v2384 = vadd.f32 0.0, %v2383
    %v2385 = vpop.f32.mrf.mxu0
    %2386 = vdwg.mxu0
    %2387 = vmatpush.bf16.msra.mxu0 0
    %2388 = vmatpush.bf16.msra.mxu0 0
    %2389 = vmatpush.bf16.msra.mxu0 0
    %2390 = vmatpush.bf16.msra.mxu0 0
    %2391 = vmatpush.bf16.msra.mxu0 0
    %2392 = vmatpush.bf16.msra.mxu0 0
    %2393 = vmatpush.bf16.msra.mxu0 %v1391
    %2394 = vmatpush.bf16.msra.mxu0 %v1312
    %2395 = vmatmul.bf16.gmra.mxu0 %v1566
    %v2396 = vpop.f32.mrf.mxu0
    %v2397 = vadd.f32 0.0, %v2396
    %v2398 = vpop.f32.mrf.mxu0
    %2399 = vdwg.mxu0
    %2400 = vmatpush.bf16.msra.mxu0 0
    %2401 = vmatpush.bf16.msra.mxu0 0
    %2402 = vmatpush.bf16.msra.mxu0 0
    %2403 = vmatpush.bf16.msra.mxu0 0
    %2404 = vmatpush.bf16.msra.mxu0 0
    %2405 = vmatpush.bf16.msra.mxu0 0
    %2406 = vmatpush.bf16.msra.mxu0 %v1392
    %2407 = vmatpush.bf16.msra.mxu0 %v1313
    %2408 = vmatmul.bf16.gmra.mxu0 %v1566
    %v2409 = vpop.f32.mrf.mxu0
    %v2410 = vadd.f32 0.0, %v2409
    %v2411 = vpop.f32.mrf.mxu0
    %2412 = vdwg.mxu0
    %2413 = vmatpush.bf16.msra.mxu0 0
    %2414 = vmatpush.bf16.msra.mxu0 0
    %2415 = vmatpush.bf16.msra.mxu0 0
    %2416 = vmatpush.bf16.msra.mxu0 0
    %2417 = vmatpush.bf16.msra.mxu0 0
    %2418 = vmatpush.bf16.msra.mxu0 0
    %2419 = vmatpush.bf16.msra.mxu0 %v1393
    %2420 = vmatpush.bf16.msra.mxu0 %v1314
    %2421 = vmatmul.bf16.gmra.mxu0 %v1566
    %v2422 = vpop.f32.mrf.mxu0
    %v2423 = vadd.f32 0.0, %v2422
    %v2424 = vpop.f32.mrf.mxu0
    %2425 = vdwg.mxu0
    %2426 = vmatpush.bf16.msra.mxu0 0
    %2427 = vmatpush.bf16.msra.mxu0 0
    %2428 = vmatpush.bf16.msra.mxu0 0
    %2429 = vmatpush.bf16.msra.mxu0 0
    %2430 = vmatpush.bf16.msra.mxu0 0
    %2431 = vmatpush.bf16.msra.mxu0 0
    %2432 = vmatpush.bf16.msra.mxu0 %v1394
    %2433 = vmatpush.bf16.msra.mxu0 %v1315
    %2434 = vmatmul.bf16.gmra.mxu0 %v1566
    %v2435 = vpop.f32.mrf.mxu0
    %v2436 = vadd.f32 0.0, %v2435
    %v2437 = vpop.f32.mrf.mxu0
    %2438 = vdwg.mxu0
    %2439 = vmatpush.bf16.msra.mxu0 0
    %2440 = vmatpush.bf16.msra.mxu0 0
    %2441 = vmatpush.bf16.msra.mxu0 0
    %2442 = vmatpush.bf16.msra.mxu0 0
    %2443 = vmatpush.bf16.msra.mxu0 0
    %2444 = vmatpush.bf16.msra.mxu0 0
    %2445 = vmatpush.bf16.msra.mxu0 %v1395
    %2446 = vmatpush.bf16.msra.mxu0 %v1316
    %2447 = vmatmul.bf16.gmra.mxu0 %v1566
    %v2448 = vpop.f32.mrf.mxu0
    %v2449 = vadd.f32 0.0, %v2448
    %v2450 = vpop.f32.mrf.mxu0
    %2451 = vdwg.mxu0
    %2452 = vmatpush.bf16.msra.mxu0 0
    %2453 = vmatpush.bf16.msra.mxu0 0
    %2454 = vmatpush.bf16.msra.mxu0 0
    %2455 = vmatpush.bf16.msra.mxu0 0
    %2456 = vmatpush.bf16.msra.mxu0 0
    %2457 = vmatpush.bf16.msra.mxu0 0
    %2458 = vmatpush.bf16.msra.mxu0 %v1396
    %2459 = vmatpush.bf16.msra.mxu0 %v1317
    %2460 = vmatmul.bf16.gmra.mxu0 %v1566
    %v2461 = vpop.f32.mrf.mxu0
    %v2462 = vadd.f32 0.0, %v2461
    %v2463 = vpop.f32.mrf.mxu0
    %2464 = vdwg.mxu0
    %2465 = vmatpush.bf16.msra.mxu0 0
    %2466 = vmatpush.bf16.msra.mxu0 0
    %2467 = vmatpush.bf16.msra.mxu0 0
    %2468 = vmatpush.bf16.msra.mxu0 0
    %2469 = vmatpush.bf16.msra.mxu0 0
    %2470 = vmatpush.bf16.msra.mxu0 0
    %2471 = vmatpush.bf16.msra.mxu0 %v1397
    %2472 = vmatpush.bf16.msra.mxu0 %v1318
    %2473 = vmatmul.bf16.gmra.mxu0 %v1566
    %v2474 = vpop.f32.mrf.mxu0
    %v2475 = vadd.f32 0.0, %v2474
    %v2476 = vpop.f32.mrf.mxu0
    %2477 = vdwg.mxu0
    %2478 = vmatpush.bf16.msra.mxu0 0
    %2479 = vmatpush.bf16.msra.mxu0 0
    %2480 = vmatpush.bf16.msra.mxu0 0
    %2481 = vmatpush.bf16.msra.mxu0 0
    %2482 = vmatpush.bf16.msra.mxu0 0
    %2483 = vmatpush.bf16.msra.mxu0 0
    %2484 = vmatpush.bf16.msra.mxu0 %v1398
    %2485 = vmatpush.bf16.msra.mxu0 %v1319
    %2486 = vmatmul.bf16.gmra.mxu0 %v1566
    %v2487 = vpop.f32.mrf.mxu0
    %v2488 = vadd.f32 0.0, %v2487
    %v2489 = vpop.f32.mrf.mxu0
    %2490 = vdwg.mxu0
    %2491 = vmatpush.bf16.msra.mxu0 0
    %2492 = vmatpush.bf16.msra.mxu0 0
    %2493 = vmatpush.bf16.msra.mxu0 0
    %2494 = vmatpush.bf16.msra.mxu0 0
    %2495 = vmatpush.bf16.msra.mxu0 0
    %2496 = vmatpush.bf16.msra.mxu0 0
    %2497 = vmatpush.bf16.msra.mxu0 %v1399
    %2498 = vmatpush.bf16.msra.mxu0 %v1320
    %2499 = vmatmul.bf16.gmra.mxu0 %v1566
    %v2500 = vpop.f32.mrf.mxu0
    %v2501 = vadd.f32 0.0, %v2500
    %v2502 = vpop.f32.mrf.mxu0
    %2503 = vdwg.mxu0
    %2504 = vmatpush.bf16.msra.mxu0 0
    %2505 = vmatpush.bf16.msra.mxu0 0
    %2506 = vmatpush.bf16.msra.mxu0 0
    %2507 = vmatpush.bf16.msra.mxu0 0
    %2508 = vmatpush.bf16.msra.mxu0 0
    %2509 = vmatpush.bf16.msra.mxu0 0
    %2510 = vmatpush.bf16.msra.mxu0 %v1400
    %2511 = vmatpush.bf16.msra.mxu0 %v1321
    %2512 = vmatmul.bf16.gmra.mxu0 %v1566
    %v2513 = vpop.f32.mrf.mxu0
    %v2514 = vadd.f32 0.0, %v2513
    %v2515 = vpop.f32.mrf.mxu0
    %2516 = vdwg.mxu0
    %2517 = vmatpush.bf16.msra.mxu0 0
    %2518 = vmatpush.bf16.msra.mxu0 0
    %2519 = vmatpush.bf16.msra.mxu0 0
    %2520 = vmatpush.bf16.msra.mxu0 0
    %2521 = vmatpush.bf16.msra.mxu0 0
    %2522 = vmatpush.bf16.msra.mxu0 0
    %2523 = vmatpush.bf16.msra.mxu0 %v1401
    %2524 = vmatpush.bf16.msra.mxu0 %v1322
    %2525 = vmatmul.bf16.gmra.mxu0 %v1566
    %v2526 = vpop.f32.mrf.mxu0
    %v2527 = vadd.f32 0.0, %v2526
    %v2528 = vpop.f32.mrf.mxu0
    %2529 = vdwg.mxu0
    %2530 = vmatpush.bf16.msra.mxu0 0
    %2531 = vmatpush.bf16.msra.mxu0 0
    %2532 = vmatpush.bf16.msra.mxu0 0
    %2533 = vmatpush.bf16.msra.mxu0 0
    %2534 = vmatpush.bf16.msra.mxu0 0
    %2535 = vmatpush.bf16.msra.mxu0 0
    %2536 = vmatpush.bf16.msra.mxu0 %v1402
    %2537 = vmatpush.bf16.msra.mxu0 %v1323
    %2538 = vmatmul.bf16.gmra.mxu0 %v1566
    %v2539 = vpop.f32.mrf.mxu0
    %v2540 = vadd.f32 0.0, %v2539
    %v2541 = vpop.f32.mrf.mxu0
    %2542 = vdwg.mxu0
    %2543 = vmatpush.bf16.msra.mxu0 0
    %2544 = vmatpush.bf16.msra.mxu0 0
    %2545 = vmatpush.bf16.msra.mxu0 0
    %2546 = vmatpush.bf16.msra.mxu0 0
    %2547 = vmatpush.bf16.msra.mxu0 0
    %2548 = vmatpush.bf16.msra.mxu0 0
    %2549 = vmatpush.bf16.msra.mxu0 %v1403
    %2550 = vmatpush.bf16.msra.mxu0 %v1324
    %2551 = vmatmul.bf16.gmra.mxu0 %v1566
    %v2552 = vpop.f32.mrf.mxu0
    %v2553 = vadd.f32 0.0, %v2552
    %v2554 = vpop.f32.mrf.mxu0
    %2555 = vdwg.mxu0
    %2556 = vmatpush.bf16.msra.mxu0 0
    %2557 = vmatpush.bf16.msra.mxu0 0
    %2558 = vmatpush.bf16.msra.mxu0 0
    %2559 = vmatpush.bf16.msra.mxu0 0
    %2560 = vmatpush.bf16.msra.mxu0 0
    %2561 = vmatpush.bf16.msra.mxu0 0
    %2562 = vmatpush.bf16.msra.mxu0 %v1404
    %2563 = vmatpush.bf16.msra.mxu0 %v1325
    %2564 = vmatmul.bf16.gmra.mxu0 %v1566
    %v2565 = vpop.f32.mrf.mxu0
    %v2566 = vadd.f32 0.0, %v2565
    %v2567 = vpop.f32.mrf.mxu0
    %2568 = vdwg.mxu0
    %2569 = vmatpush.bf16.msra.mxu0 0
    %2570 = vmatpush.bf16.msra.mxu0 0
    %2571 = vmatpush.bf16.msra.mxu0 0
    %2572 = vmatpush.bf16.msra.mxu0 0
    %2573 = vmatpush.bf16.msra.mxu0 0
    %2574 = vmatpush.bf16.msra.mxu0 0
    %2575 = vmatpush.bf16.msra.mxu0 %v1405
    %2576 = vmatpush.bf16.msra.mxu0 %v1326
    %2577 = vmatmul.bf16.gmra.mxu0 %v1566
    %v2578 = vpop.f32.mrf.mxu0
    %v2579 = vadd.f32 0.0, %v2578
    %v2580 = vpop.f32.mrf.mxu0
    %2581 = vdwg.mxu0
    %2582 = vmatpush.bf16.msra.mxu0 0
    %2583 = vmatpush.bf16.msra.mxu0 0
    %2584 = vmatpush.bf16.msra.mxu0 0
    %2585 = vmatpush.bf16.msra.mxu0 0
    %2586 = vmatpush.bf16.msra.mxu0 0
    %2587 = vmatpush.bf16.msra.mxu0 0
    %2588 = vmatpush.bf16.msra.mxu0 %v1406
    %2589 = vmatpush.bf16.msra.mxu0 %v1327
    %2590 = vmatmul.bf16.gmra.mxu0 %v1566
    %v2591 = vpop.f32.mrf.mxu0
    %v2592 = vadd.f32 0.0, %v2591
    %v2593 = vpop.f32.mrf.mxu0
    %2594 = vdwg.mxu0
    %v2674 = vrot.slane %v1591, 6
    %v2675 = vrot.slane %v1604, 4
    %v2676 = vrot.slane %v1617, 2
    %v2677 = vrot.slane %v1643, 6
    %v2678 = vrot.slane %v1656, 4
    %v2679 = vrot.slane %v1669, 2
    %v2680 = vrot.slane %v1695, 6
    %v2681 = vrot.slane %v1708, 4
    %v2682 = vrot.slane %v1721, 2
    %v2683 = vrot.slane %v1747, 6
    %v2684 = vrot.slane %v1760, 4
    %v2685 = vrot.slane %v1773, 2
    %v2686 = vrot.slane %v1799, 6
    %v2687 = vrot.slane %v1812, 4
    %v2688 = vrot.slane %v1825, 2
    %v2689 = vrot.slane %v1851, 6
    %v2690 = vrot.slane %v1864, 4
    %v2691 = vrot.slane %v1877, 2
    %v2692 = vrot.slane %v1903, 6
    %v2693 = vrot.slane %v1916, 4
    %v2694 = vrot.slane %v1929, 2
    %v2695 = vrot.slane %v1955, 6
    %v2696 = vrot.slane %v1968, 4
    %v2697 = vrot.slane %v1981, 2
    %v2698 = vrot.slane %v2007, 6
    %v2699 = vrot.slane %v2020, 4
    %v2700 = vrot.slane %v2033, 2
    %v2701 = vrot.slane %v2059, 6
    %v2702 = vrot.slane %v2072, 4
    %v2703 = vrot.slane %v2085, 2
    %v2704 = vrot.slane %v2111, 6
    %v2705 = vrot.slane %v2124, 4
    %v2706 = vrot.slane %v2137, 2
    %v2707 = vrot.slane %v2163, 6
    %v2708 = vrot.slane %v2176, 4
    %v2709 = vrot.slane %v2189, 2
    %v2710 = vrot.slane %v2215, 6
    %v2711 = vrot.slane %v2228, 4
    %v2712 = vrot.slane %v2241, 2
    %v2713 = vrot.slane %v2267, 6
    %v2714 = vrot.slane %v2280, 4
    %v2715 = vrot.slane %v2293, 2
    %v2716 = vrot.slane %v2319, 6
    %v2717 = vrot.slane %v2332, 4
    %v2718 = vrot.slane %v2345, 2
    %v2719 = vrot.slane %v2371, 6
    %v2720 = vrot.slane %v2384, 4
    %v2721 = vrot.slane %v2397, 2
    %v2722 = vrot.slane %v2423, 6
    %v2723 = vrot.slane %v2436, 4
    %v2724 = vrot.slane %v2449, 2
    %v2725 = vrot.slane %v2475, 6
    %v2726 = vrot.slane %v2488, 4
    %v2727 = vrot.slane %v2501, 2
    %v2728 = vrot.slane %v2527, 6
    %v2729 = vrot.slane %v2540, 4
    %v2730 = vrot.slane %v2553, 2
    %v2731 = vrot.slane %v2579, 6
    %v2732 = vrot.slane %v2592, 4
    %vm2733 = vcmask 1041408
    %v2734 = vsel %vm2733, %v1578, %v2674
    %vm2735 = vcmask 1045508
    %v2736 = vsel %vm2735, %v2675, %v2676
    %vm2737 = vcmask 1043456
    %v2738 = vsel %vm2737, %v2734, %v2736
    %v2739 = vsel %vm2733, %v1630, %v2677
    %v2740 = vsel %vm2735, %v2678, %v2679
    %v2741 = vsel %vm2737, %v2739, %v2740
    %v2742 = vsel %vm2733, %v1682, %v2680
    %v2743 = vsel %vm2735, %v2681, %v2682
    %v2744 = vsel %vm2737, %v2742, %v2743
    %v2745 = vsel %vm2733, %v1734, %v2683
    %v2746 = vsel %vm2735, %v2684, %v2685
    %v2747 = vsel %vm2737, %v2745, %v2746
    %v2748 = vsel %vm2733, %v1786, %v2686
    %v2749 = vsel %vm2735, %v2687, %v2688
    %v2750 = vsel %vm2737, %v2748, %v2749
    %v2751 = vsel %vm2733, %v1838, %v2689
    %v2752 = vsel %vm2735, %v2690, %v2691
    %v2753 = vsel %vm2737, %v2751, %v2752
    %v2754 = vsel %vm2733, %v1890, %v2692
    %v2755 = vsel %vm2735, %v2693, %v2694
    %v2756 = vsel %vm2737, %v2754, %v2755
    %v2757 = vsel %vm2733, %v1942, %v2695
    %v2758 = vsel %vm2735, %v2696, %v2697
    %v2759 = vsel %vm2737, %v2757, %v2758
    %v2760 = vsel %vm2733, %v1994, %v2698
    %v2761 = vsel %vm2735, %v2699, %v2700
    %v2762 = vsel %vm2737, %v2760, %v2761
    %v2763 = vsel %vm2733, %v2046, %v2701
    %v2764 = vsel %vm2735, %v2702, %v2703
    %v2765 = vsel %vm2737, %v2763, %v2764
    %v2766 = vsel %vm2733, %v2098, %v2704
    %v2767 = vsel %vm2735, %v2705, %v2706
    %v2768 = vsel %vm2737, %v2766, %v2767
    %v2769 = vsel %vm2733, %v2150, %v2707
    %v2770 = vsel %vm2735, %v2708, %v2709
    %v2771 = vsel %vm2737, %v2769, %v2770
    %v2772 = vsel %vm2733, %v2202, %v2710
    %v2773 = vsel %vm2735, %v2711, %v2712
    %v2774 = vsel %vm2737, %v2772, %v2773
    %v2775 = vsel %vm2733, %v2254, %v2713
    %v2776 = vsel %vm2735, %v2714, %v2715
    %v2777 = vsel %vm2737, %v2775, %v2776
    %v2778 = vsel %vm2733, %v2306, %v2716
    %v2779 = vsel %vm2735, %v2717, %v2718
    %v2780 = vsel %vm2737, %v2778, %v2779
    %v2781 = vsel %vm2733, %v2358, %v2719
    %v2782 = vsel %vm2735, %v2720, %v2721
    %v2783 = vsel %vm2737, %v2781, %v2782
    %v2784 = vsel %vm2733, %v2410, %v2722
    %v2785 = vsel %vm2735, %v2723, %v2724
    %v2786 = vsel %vm2737, %v2784, %v2785
    %v2787 = vsel %vm2733, %v2462, %v2725
    %v2788 = vsel %vm2735, %v2726, %v2727
    %v2789 = vsel %vm2737, %v2787, %v2788
    %v2790 = vsel %vm2733, %v2514, %v2728
    %v2791 = vsel %vm2735, %v2729, %v2730
    %v2792 = vsel %vm2737, %v2790, %v2791
    %v2793 = vsel %vm2733, %v2566, %v2731
    %v2794 = vsel %vm2737, %v2793, %v2732
    %2815 = vst [vmem:[%s13] sm:$0xff] %v2738
    %2816 = vst [vmem:[%s13 + $0x8] sm:$0xff] %v2741
    %2817 = vst [vmem:[%s13 + $0x10] sm:$0xff] %v2744
    %2818 = vst [vmem:[%s13 + $0x18] sm:$0xff] %v2747
    %2819 = vst [vmem:[%s13 + $0x20] sm:$0xff] %v2750
    %2820 = vst [vmem:[%s13 + $0x28] sm:$0xff] %v2753
    %2821 = vst [vmem:[%s13 + $0x30] sm:$0xff] %v2756
    %2822 = vst [vmem:[%s13 + $0x38] sm:$0xff] %v2759
    %2823 = vst [vmem:[%s13 + $0x40] sm:$0xff] %v2762
    %2824 = vst [vmem:[%s13 + $0x48] sm:$0xff] %v2765
    %2825 = vst [vmem:[%s13 + $0x50] sm:$0xff] %v2768
    %2826 = vst [vmem:[%s13 + $0x58] sm:$0xff] %v2771
    %2827 = vst [vmem:[%s13 + $0x60] sm:$0xff] %v2774
    %2828 = vst [vmem:[%s13 + $0x68] sm:$0xff] %v2777
    %2829 = vst [vmem:[%s13 + $0x70] sm:$0xff] %v2780
    %2830 = vst [vmem:[%s13 + $0x78] sm:$0xff] %v2783
    %2831 = vst [vmem:[%s13 + $0x80] sm:$0xff] %v2786
    %2832 = vst [vmem:[%s13 + $0x88] sm:$0xff] %v2789
    %2833 = vst [vmem:[%s13 + $0x90] sm:$0xff] %v2792
    %2834 = vst [vmem:[%s13 + $0x98] sm:$0x3f] %v2794
    // Predicated region
    $region54: #{inference_forward.1} parent=1 // pred_check
      _
    $region55: #{inference_forward.1} parent=1 // pred_check_branch
      %2836 = sbr.rel (0) target = $region57
    $region56: #{inference_forward.1} parent=1 // pred_region
      %2838 = vsyncadd [#allocation4], 0
      %s2840 = sshll.u32 [#allocation5], 4
      %s2841 = int_to_ptr.vmem [resolvable:$true] %s2840
      %s2842 = sshll.u32 %s12, 4
      %s2843 = int_to_ptr.hbm [resolvable:$true] %s2842
      %2845 = dma.vmem_to_hbm [thread:$0]  %s2841, 32, %s2843, [#allocation4]
    $region57: #{inference_forward.1} parent=1 // pred_fallthru
      _
    // Predicated region
    $region58: #{inference_forward.1} parent=1 // pred_check
      _
    $region59: #{inference_forward.1} parent=1 // pred_check_branch
      %2847 = sbr.rel (0) target = $region61
    $region60: #{inference_forward.1} parent=1 // pred_region
      _
    $region61: #{inference_forward.1} parent=1 // pred_fallthru
      _
    // Predicated region
    $region62: #{inference_forward.1} parent=1 // pred_check
      _
    $region63: #{inference_forward.1} parent=1 // pred_check_branch
      %2849 = sbr.rel (0) target = $region65
    $region64: #{inference_forward.1} parent=1 // pred_region
      %2851 = dma.done [#allocation4], 32
    $region65: #{inference_forward.1} parent=1 // pred_fallthru
      _
    // Predicated region
    $region66: #{inference_forward.1} parent=1 // pred_check
      _
    $region67: #{inference_forward.1} parent=1 // pred_check_branch
      %2853 = sbr.rel (0) target = $region69
    $region68: #{inference_forward.1} parent=1 // pred_region
      _
    $region69: #{inference_forward.1} parent=1 // pred_fallthru
      _
    %2854 = vsyncpa [#allocation3], 1
    %2855 = vsyncpa [#allocation4], 1

</llo_original>
